<compile_context>
chip_gen: v7x
topology: tpu7x:2x2x1
jax: 0.10.0
libtpu: 0.0.40
codegen_flags: <defaults>
</compile_context>

<pallas_src>
import jax
import jax.numpy as jnp
from jax import lax
from jax.experimental import pallas as pl
from jax.experimental.pallas import tpu as pltpu


# ---------------------------------------------------------------------------
# Fused residual-block kernel: one grid step == one batch sample.
# ---------------------------------------------------------------------------
def _make_block_kernel(Ho, Wo, Cin, Cout, eps, downsample):
    n_elems = float(Ho * Wo * Cout)
    f32 = jnp.float32
    bf16 = jnp.bfloat16

    def group_norm(y, g_ref, b_ref):
        # GroupNorm(num_groups=1): per-sample stats over (C, H, W), biased var,
        # single-pass sum / sum-of-squares, all in f32 (safe on v5e too).
        s = jnp.sum(y)
        ss = jnp.sum(y * y)
        mean = s / n_elems
        var = jnp.maximum(ss / n_elems - mean * mean, 0.0)
        return (y - mean) * lax.rsqrt(var + eps) * g_ref[...] + b_ref[...]

    def conv3x3(tap_fn, w_ref):
        # 9 shifted-tap matmuls accumulated in f32 (bf16 MXU inputs).
        acc = jnp.zeros((Ho, Wo * Cout), f32)
        for kh in range(3):
            for kw in range(3):
                acc = acc + jnp.dot(tap_fn(kh, kw), w_ref[kh * 3 + kw],
                                    preferred_element_type=f32)
        return acc

    def kernel(*refs):
        if downsample:
            (t1_ref, w1_ref, g1_ref, b1_ref, w2_ref, g2_ref, b2_ref,
             xs_ref, ws_ref, gs_ref, bs_ref, o_ref, ypad_ref) = refs
        else:
            (xp_ref, w1_ref, g1_ref, b1_ref, w2_ref, g2_ref, b2_ref,
             o_ref, ypad_ref) = refs
            # Load padded sample once (bf16 from HBM), upcast; taps are cheap
            # static value slices of this [H+2, (W+2)*Cin] tile.
            xp = xp_ref[...].astype(f32)

        # ---- conv1 (3x3; stride-2 handled by pre-gathered taps) -------------
        if downsample:
            y1 = conv3x3(lambda kh, kw: t1_ref[kh * 3 + kw], w1_ref)
        else:
            y1 = conv3x3(
                lambda kh, kw: xp[kh:kh + Ho,
                                  kw * Cin:(kw + Wo) * Cin].astype(bf16),
                w1_ref)

        # ---- GroupNorm + ReLU ------------------------------------------------
        y1 = jnp.maximum(group_norm(y1, g1_ref, b1_ref), 0.0)

        # ---- stage y1 zero-padded in VMEM scratch (conv2 never leaves VMEM) --
        ypad_ref[...] = jnp.zeros_like(ypad_ref)
        ypad_ref[pl.ds(1, Ho), pl.ds(Cout, Wo * Cout)] = y1

        # ---- conv2 (3x3, stride 1) + GroupNorm -------------------------------
        y2 = conv3x3(
            lambda kh, kw: ypad_ref[pl.ds(kh, Ho),
                                    pl.ds(kw * Cout, Wo * Cout)].astype(bf16),
            w2_ref)
        y2 = group_norm(y2, g2_ref, b2_ref)

        # ---- shortcut (fused: 1x1 conv + GN, or identity) --------------------
        if downsample:
            sc = jnp.dot(xs_ref[...], ws_ref[...], preferred_element_type=f32)
            sc = group_norm(sc, gs_ref, bs_ref)
        else:
            sc = xp[1:Ho + 1, Cin:(Wo + 1) * Cin]      # identity (Cin == Cout)

        o_ref[...] = jnp.maximum(y2 + sc, 0.0).astype(o_ref.dtype)

    return kernel


# ---------------------------------------------------------------------------
# Wrapper-side weight / layout prep.
# ---------------------------------------------------------------------------
def _kron_taps(w_taps, Wo):
    """w_taps: [T, Ci, Co] -> block-diagonal [T, Wo*Ci, Wo*Co] (kron(I_Wo, w))."""
    T, Ci, Co = w_taps.shape
    eye = jnp.eye(Wo, dtype=w_taps.dtype)
    return jnp.einsum('ab,tio->taibo', eye, w_taps).reshape(T, Wo * Ci, Wo * Co)


def _kron_1x1(w, Wo):
    Ci, Co = w.shape
    eye = jnp.eye(Wo, dtype=w.dtype)
    return jnp.einsum('ab,io->aibo', eye, w).reshape(Wo * Ci, Wo * Co)


def _tile_cf(v, Wo):
    """Per-channel affine param [C] -> [1, Wo*C] matching the (w, c) lanes."""
    return jnp.tile(v, Wo).reshape(1, Wo * v.shape[0]).astype(jnp.float32)


def block_forward(x, p, *, eps=1e-5):
    """x: [N, H, W, Cin] NHWC -> [N, Ho, Wo, Cout] NHWC (bf16)."""
    N, H, W, Cin = x.shape
    stride = int(p["stride"])
    Cout = p["w1"].shape[-1]
    Ho, Wo = H // stride, W // stride
    bf16 = jnp.bfloat16

    w1k = _kron_taps(p["w1"].reshape(9, Cin, Cout), Wo).astype(bf16)
    w2k = _kron_taps(p["w2"].reshape(9, Cout, Cout), Wo).astype(bf16)
    g1, b1 = _tile_cf(p["g1"], Wo), _tile_cf(p["b1"], Wo)
    g2, b2 = _tile_cf(p["g2"], Wo), _tile_cf(p["b2"], Wo)

    par_spec = lambda shape: pl.BlockSpec(shape, lambda n: (0,) * len(shape))
    vec_spec = pl.BlockSpec((1, Wo * Cout), lambda n: (0, 0))

    downsample = stride != 1
    if downsample:
        # Stride-2 conv1 taps and the 1x1/stride-2 shortcut input are gathered
        # once here (strided spatial gather is awkward in-kernel); everything
        # else is fused inside the kernel.
        xp = jnp.pad(x, ((0, 0), (1, 1), (1, 1), (0, 0))).astype(bf16)
        taps = jnp.stack(
            [xp[:, kh:kh + 2 * Ho:2, kw:kw + 2 * Wo:2, :].reshape(N, Ho, Wo * Cin)
             for kh in range(3) for kw in range(3)],
            axis=1)                                            # [N, 9, Ho, Wo*Cin]
        xs = x[:, ::2, ::2, :].reshape(N, Ho, Wo * Cin).astype(bf16)
        wsk = _kron_1x1(p["ws"], Wo).astype(bf16)
        gs, bs = _tile_cf(p["gs"], Wo), _tile_cf(p["bs"], Wo)

        args = (taps, w1k, g1, b1, w2k, g2, b2, xs, wsk, gs, bs)
        in_specs = [
            pl.BlockSpec((None, 9, Ho, Wo * Cin), lambda n: (n, 0, 0, 0)),
            par_spec((9, Wo * Cin, Wo * Cout)),
            vec_spec, vec_spec,
            par_spec((9, Wo * Cout, Wo * Cout)),
            vec_spec, vec_spec,
            pl.BlockSpec((None, Ho, Wo * Cin), lambda n: (n, 0, 0)),
            par_spec((Wo * Cin, Wo * Cout)),
            vec_spec, vec_spec,
        ]
    else:
        assert Cin == Cout, "identity shortcut needs Cin == Cout"
        # Flat-row padded input: [N, H+2, (W+2)*Cin], bf16 (halves HBM traffic).
        xpadf = jnp.pad(x.reshape(N, H, W * Cin),
                        ((0, 0), (1, 1), (Cin, Cin))).astype(bf16)
        args = (xpadf, w1k, g1, b1, w2k, g2, b2)
        in_specs = [
            pl.BlockSpec((None, H + 2, (W + 2) * Cin), lambda n: (n, 0, 0)),
            par_spec((9, Wo * Cin, Wo * Cout)),
            vec_spec, vec_spec,
            par_spec((9, Wo * Cout, Wo * Cout)),
            vec_spec, vec_spec,
        ]

    # TODO(synk): for real ResNet shapes (e.g. 56x56x256) tile rows/P with GN
    # partial sums + pl.when finalize so one sample need not fit VMEM, and for
    # large C switch taps to plain [P, C] @ [C, Cout] (the kron(I_W, w) trick
    # targets tiny channel counts / lane density).
    out_flat = pl.pallas_call(
        _make_block_kernel(Ho, Wo, Cin, Cout, eps, downsample),
        out_shape=jax.ShapeDtypeStruct((N, Ho, Wo * Cout), bf16),
        grid=(N,),
        in_specs=in_specs,
        out_specs=pl.BlockSpec((None, Ho, Wo * Cout), lambda n: (n, 0, 0)),
        scratch_shapes=[pltpu.VMEM((Ho + 2, (Wo + 2) * Cout), jnp.float32)],
        compiler_params=pltpu.CompilerParams(
            dimension_semantics=("parallel",),        # v7x: shard batch over 2 TCs
            vmem_limit_bytes=32 * 1024 * 1024),
    )(*args)
    return out_flat.reshape(N, Ho, Wo, Cout)


# ---------------------------------------------------------------------------
# Parameter init + BlockGroup wiring.
# ---------------------------------------------------------------------------
def init_block_params(key, cin, cout, stride):
    k1, k2, k3 = jax.random.split(key, 3)
    p = {
        "w1": jax.random.normal(k1, (3, 3, cin, cout), jnp.float32)
        / jnp.sqrt(9.0 * cin),
        "g1": jnp.ones((cout,), jnp.float32),
        "b1": jnp.zeros((cout,), jnp.float32),
        "w2": jax.random.normal(k2, (3, 3, cout, cout), jnp.float32)
        / jnp.sqrt(9.0 * cout),
        "g2": jnp.ones((cout,), jnp.float32),
        "b2": jnp.zeros((cout,), jnp.float32),
        "stride": stride,
    }
    if stride != 1:
        assert stride == 2
        p["ws"] = jax.random.normal(k3, (cin, cout), jnp.float32) / jnp.sqrt(float(cin))
        p["gs"] = jnp.ones((cout,), jnp.float32)
        p["bs"] = jnp.zeros((cout,), jnp.float32)
    return p


def init_blockgroup_params(key, in_chans, out_chans, blocks, stride):
    keys = jax.random.split(key, blocks)
    params = [init_block_params(keys[0], in_chans, out_chans, stride)]
    for i in range(1, blocks):
        params.append(init_block_params(keys[i], out_chans, out_chans, 1))
    return params


def blockgroup_forward(x_nchw, params):
    x = jnp.transpose(x_nchw, (0, 2, 3, 1))        # NCHW -> NHWC
    for p in params:
        x = block_forward(x, p)
    x = x.astype(jnp.float32)
    return jnp.transpose(x, (0, 3, 1, 2))          # NHWC -> NCHW (match PyTorch)


if __name__ == "__main__":
    key = jax.random.PRNGKey(0)
    kx, kp = jax.random.split(key)

    # Small shapes consistent with the module: N=2, Cin=4, H=W=16.
    in_chans, out_chans, blocks, stride, spatial = 4, 8, 2, 2, 16
    x = jax.random.normal(kx, (2, in_chans, spatial, spatial), jnp.float32)  # NCHW

    params = init_blockgroup_params(kp, in_chans, out_chans, blocks, stride)
    out = blockgroup_forward(x, params)
    out = jax.block_until_ready(out)

    expected = (2, out_chans, spatial // stride, spatial // stride)
    assert out.shape == expected, (out.shape, expected)
    assert bool(jnp.all(jnp.isfinite(out)))
    assert bool(jnp.all(out >= 0.0))  # final op is ReLU
    print("KERNEL_OK")
</pallas_src>

<mosaic_0001>
module attributes {stable_mosaic.version = 11 : i64} {
  func.func @kernel(%arg0: i32, %arg1: memref<1x9x8x32xbf16, #tpu.memory_space<vmem>>, %arg2: memref<9x32x64xbf16, #tpu.memory_space<vmem>>, %arg3: memref<1x64xf32, #tpu.memory_space<vmem>>, %arg4: memref<1x64xf32, #tpu.memory_space<vmem>>, %arg5: memref<9x64x64xbf16, #tpu.memory_space<vmem>>, %arg6: memref<1x64xf32, #tpu.memory_space<vmem>>, %arg7: memref<1x64xf32, #tpu.memory_space<vmem>>, %arg8: memref<1x8x32xbf16, #tpu.memory_space<vmem>>, %arg9: memref<32x64xbf16, #tpu.memory_space<vmem>>, %arg10: memref<1x64xf32, #tpu.memory_space<vmem>>, %arg11: memref<1x64xf32, #tpu.memory_space<vmem>>, %arg12: memref<1x8x64xbf16, #tpu.memory_space<vmem>>, %arg13: memref<10x80xf32, #tpu.memory_space<vmem>>) attributes {dimension_semantics = [#tpu.dimension_semantics<parallel>], iteration_bounds = array<i64: 2>, scalar_prefetch = 0 : i64, scratch_operands = 1 : i64, tpu.core_type = #tpu.core_type<tc>, window_params = [{transform_indices = @transform_0, window_bounds = array<i64: 1, 9, 8, 32>}, {pipeline_mode = #tpu.pipeline_mode<synchronous>, transform_indices = @transform_1, window_bounds = array<i64: 9, 32, 64>}, {pipeline_mode = #tpu.pipeline_mode<synchronous>, transform_indices = @transform_2, window_bounds = array<i64: 1, 64>}, {pipeline_mode = #tpu.pipeline_mode<synchronous>, transform_indices = @transform_3, window_bounds = array<i64: 1, 64>}, {pipeline_mode = #tpu.pipeline_mode<synchronous>, transform_indices = @transform_4, window_bounds = array<i64: 9, 64, 64>}, {pipeline_mode = #tpu.pipeline_mode<synchronous>, transform_indices = @transform_5, window_bounds = array<i64: 1, 64>}, {pipeline_mode = #tpu.pipeline_mode<synchronous>, transform_indices = @transform_6, window_bounds = array<i64: 1, 64>}, {transform_indices = @transform_7, window_bounds = array<i64: 1, 8, 32>}, {pipeline_mode = #tpu.pipeline_mode<synchronous>, transform_indices = @transform_8, window_bounds = array<i64: 32, 64>}, {pipeline_mode = #tpu.pipeline_mode<synchronous>, transform_indices = @transform_9, window_bounds = array<i64: 1, 64>}, {pipeline_mode = #tpu.pipeline_mode<synchronous>, transform_indices = @transform_10, window_bounds = array<i64: 1, 64>}, {transform_indices = @transform_11, window_bounds = array<i64: 1, 8, 64>}]} {
    %cst = arith.constant 0.000000e+00 : f32
    %0 = vector.broadcast %cst : f32 to vector<8x64xf32>
    %c0 = arith.constant 0 : index
    %c0_0 = arith.constant 0 : index
    %c0_1 = arith.constant 0 : index
    %c0_2 = arith.constant 0 : index
    %1 = vector.load %arg1[%c0, %c0_0, %c0_1, %c0_2] : memref<1x9x8x32xbf16, #tpu.memory_space<vmem>>, vector<1x1x8x32xbf16>
    %2 = vector.shape_cast %1 : vector<1x1x8x32xbf16> to vector<8x32xbf16>
    %c0_3 = arith.constant 0 : index
    %c0_4 = arith.constant 0 : index
    %c0_5 = arith.constant 0 : index
    %3 = vector.load %arg2[%c0_3, %c0_4, %c0_5] : memref<9x32x64xbf16, #tpu.memory_space<vmem>>, vector<1x32x64xbf16>
    %4 = vector.shape_cast %3 : vector<1x32x64xbf16> to vector<32x64xbf16>
    %cst_6 = arith.constant dense<0.000000e+00> : vector<8x64xf32>
    %5 = tpu.matmul %2, %4, %cst_6 {dimension_numbers = #tpu.dot_dimension_numbers<[1], [0], [0], [1], [0, 0, 1, 1], [], []>} : vector<8x32xbf16>, vector<32x64xbf16>, vector<8x64xf32> -> vector<8x64xf32>
    %6 = arith.addf %0, %5 : vector<8x64xf32>
    %c0_7 = arith.constant 0 : index
    %c1 = arith.constant 1 : index
    %c0_8 = arith.constant 0 : index
    %c0_9 = arith.constant 0 : index
    %7 = vector.load %arg1[%c0_7, %c1, %c0_8, %c0_9] : memref<1x9x8x32xbf16, #tpu.memory_space<vmem>>, vector<1x1x8x32xbf16>
    %8 = vector.shape_cast %7 : vector<1x1x8x32xbf16> to vector<8x32xbf16>
    %c1_10 = arith.constant 1 : index
    %c0_11 = arith.constant 0 : index
    %c0_12 = arith.constant 0 : index
    %9 = vector.load %arg2[%c1_10, %c0_11, %c0_12] : memref<9x32x64xbf16, #tpu.memory_space<vmem>>, vector<1x32x64xbf16>
    %10 = vector.shape_cast %9 : vector<1x32x64xbf16> to vector<32x64xbf16>
    %cst_13 = arith.constant dense<0.000000e+00> : vector<8x64xf32>
    %11 = tpu.matmul %8, %10, %cst_13 {dimension_numbers = #tpu.dot_dimension_numbers<[1], [0], [0], [1], [0, 0, 1, 1], [], []>} : vector<8x32xbf16>, vector<32x64xbf16>, vector<8x64xf32> -> vector<8x64xf32>
    %12 = arith.addf %6, %11 : vector<8x64xf32>
    %c0_14 = arith.constant 0 : index
    %c2 = arith.constant 2 : index
    %c0_15 = arith.constant 0 : index
    %c0_16 = arith.constant 0 : index
    %13 = vector.load %arg1[%c0_14, %c2, %c0_15, %c0_16] : memref<1x9x8x32xbf16, #tpu.memory_space<vmem>>, vector<1x1x8x32xbf16>
    %14 = vector.shape_cast %13 : vector<1x1x8x32xbf16> to vector<8x32xbf16>
    %c2_17 = arith.constant 2 : index
    %c0_18 = arith.constant 0 : index
    %c0_19 = arith.constant 0 : index
    %15 = vector.load %arg2[%c2_17, %c0_18, %c0_19] : memref<9x32x64xbf16, #tpu.memory_space<vmem>>, vector<1x32x64xbf16>
    %16 = vector.shape_cast %15 : vector<1x32x64xbf16> to vector<32x64xbf16>
    %cst_20 = arith.constant dense<0.000000e+00> : vector<8x64xf32>
    %17 = tpu.matmul %14, %16, %cst_20 {dimension_numbers = #tpu.dot_dimension_numbers<[1], [0], [0], [1], [0, 0, 1, 1], [], []>} : vector<8x32xbf16>, vector<32x64xbf16>, vector<8x64xf32> -> vector<8x64xf32>
    %18 = arith.addf %12, %17 : vector<8x64xf32>
    %c0_21 = arith.constant 0 : index
    %c3 = arith.constant 3 : index
    %c0_22 = arith.constant 0 : index
    %c0_23 = arith.constant 0 : index
    %19 = vector.load %arg1[%c0_21, %c3, %c0_22, %c0_23] : memref<1x9x8x32xbf16, #tpu.memory_space<vmem>>, vector<1x1x8x32xbf16>
    %20 = vector.shape_cast %19 : vector<1x1x8x32xbf16> to vector<8x32xbf16>
    %c3_24 = arith.constant 3 : index
    %c0_25 = arith.constant 0 : index
    %c0_26 = arith.constant 0 : index
    %21 = vector.load %arg2[%c3_24, %c0_25, %c0_26] : memref<9x32x64xbf16, #tpu.memory_space<vmem>>, vector<1x32x64xbf16>
    %22 = vector.shape_cast %21 : vector<1x32x64xbf16> to vector<32x64xbf16>
    %cst_27 = arith.constant dense<0.000000e+00> : vector<8x64xf32>
    %23 = tpu.matmul %20, %22, %cst_27 {dimension_numbers = #tpu.dot_dimension_numbers<[1], [0], [0], [1], [0, 0, 1, 1], [], []>} : vector<8x32xbf16>, vector<32x64xbf16>, vector<8x64xf32> -> vector<8x64xf32>
    %24 = arith.addf %18, %23 : vector<8x64xf32>
    %c0_28 = arith.constant 0 : index
    %c4 = arith.constant 4 : index
    %c0_29 = arith.constant 0 : index
    %c0_30 = arith.constant 0 : index
    %25 = vector.load %arg1[%c0_28, %c4, %c0_29, %c0_30] : memref<1x9x8x32xbf16, #tpu.memory_space<vmem>>, vector<1x1x8x32xbf16>
    %26 = vector.shape_cast %25 : vector<1x1x8x32xbf16> to vector<8x32xbf16>
    %c4_31 = arith.constant 4 : index
    %c0_32 = arith.constant 0 : index
    %c0_33 = arith.constant 0 : index
    %27 = vector.load %arg2[%c4_31, %c0_32, %c0_33] : memref<9x32x64xbf16, #tpu.memory_space<vmem>>, vector<1x32x64xbf16>
    %28 = vector.shape_cast %27 : vector<1x32x64xbf16> to vector<32x64xbf16>
    %cst_34 = arith.constant dense<0.000000e+00> : vector<8x64xf32>
    %29 = tpu.matmul %26, %28, %cst_34 {dimension_numbers = #tpu.dot_dimension_numbers<[1], [0], [0], [1], [0, 0, 1, 1], [], []>} : vector<8x32xbf16>, vector<32x64xbf16>, vector<8x64xf32> -> vector<8x64xf32>
    %30 = arith.addf %24, %29 : vector<8x64xf32>
    %c0_35 = arith.constant 0 : index
    %c5 = arith.constant 5 : index
    %c0_36 = arith.constant 0 : index
    %c0_37 = arith.constant 0 : index
    %31 = vector.load %arg1[%c0_35, %c5, %c0_36, %c0_37] : memref<1x9x8x32xbf16, #tpu.memory_space<vmem>>, vector<1x1x8x32xbf16>
    %32 = vector.shape_cast %31 : vector<1x1x8x32xbf16> to vector<8x32xbf16>
    %c5_38 = arith.constant 5 : index
    %c0_39 = arith.constant 0 : index
    %c0_40 = arith.constant 0 : index
    %33 = vector.load %arg2[%c5_38, %c0_39, %c0_40] : memref<9x32x64xbf16, #tpu.memory_space<vmem>>, vector<1x32x64xbf16>
    %34 = vector.shape_cast %33 : vector<1x32x64xbf16> to vector<32x64xbf16>
    %cst_41 = arith.constant dense<0.000000e+00> : vector<8x64xf32>
    %35 = tpu.matmul %32, %34, %cst_41 {dimension_numbers = #tpu.dot_dimension_numbers<[1], [0], [0], [1], [0, 0, 1, 1], [], []>} : vector<8x32xbf16>, vector<32x64xbf16>, vector<8x64xf32> -> vector<8x64xf32>
    %36 = arith.addf %30, %35 : vector<8x64xf32>
    %c0_42 = arith.constant 0 : index
    %c6 = arith.constant 6 : index
    %c0_43 = arith.constant 0 : index
    %c0_44 = arith.constant 0 : index
    %37 = vector.load %arg1[%c0_42, %c6, %c0_43, %c0_44] : memref<1x9x8x32xbf16, #tpu.memory_space<vmem>>, vector<1x1x8x32xbf16>
    %38 = vector.shape_cast %37 : vector<1x1x8x32xbf16> to vector<8x32xbf16>
    %c6_45 = arith.constant 6 : index
    %c0_46 = arith.constant 0 : index
    %c0_47 = arith.constant 0 : index
    %39 = vector.load %arg2[%c6_45, %c0_46, %c0_47] : memref<9x32x64xbf16, #tpu.memory_space<vmem>>, vector<1x32x64xbf16>
    %40 = vector.shape_cast %39 : vector<1x32x64xbf16> to vector<32x64xbf16>
    %cst_48 = arith.constant dense<0.000000e+00> : vector<8x64xf32>
    %41 = tpu.matmul %38, %40, %cst_48 {dimension_numbers = #tpu.dot_dimension_numbers<[1], [0], [0], [1], [0, 0, 1, 1], [], []>} : vector<8x32xbf16>, vector<32x64xbf16>, vector<8x64xf32> -> vector<8x64xf32>
    %42 = arith.addf %36, %41 : vector<8x64xf32>
    %c0_49 = arith.constant 0 : index
    %c7 = arith.constant 7 : index
    %c0_50 = arith.constant 0 : index
    %c0_51 = arith.constant 0 : index
    %43 = vector.load %arg1[%c0_49, %c7, %c0_50, %c0_51] : memref<1x9x8x32xbf16, #tpu.memory_space<vmem>>, vector<1x1x8x32xbf16>
    %44 = vector.shape_cast %43 : vector<1x1x8x32xbf16> to vector<8x32xbf16>
    %c7_52 = arith.constant 7 : index
    %c0_53 = arith.constant 0 : index
    %c0_54 = arith.constant 0 : index
    %45 = vector.load %arg2[%c7_52, %c0_53, %c0_54] : memref<9x32x64xbf16, #tpu.memory_space<vmem>>, vector<1x32x64xbf16>
    %46 = vector.shape_cast %45 : vector<1x32x64xbf16> to vector<32x64xbf16>
    %cst_55 = arith.constant dense<0.000000e+00> : vector<8x64xf32>
    %47 = tpu.matmul %44, %46, %cst_55 {dimension_numbers = #tpu.dot_dimension_numbers<[1], [0], [0], [1], [0, 0, 1, 1], [], []>} : vector<8x32xbf16>, vector<32x64xbf16>, vector<8x64xf32> -> vector<8x64xf32>
    %48 = arith.addf %42, %47 : vector<8x64xf32>
    %c0_56 = arith.constant 0 : index
    %c8 = arith.constant 8 : index
    %c0_57 = arith.constant 0 : index
    %c0_58 = arith.constant 0 : index
    %49 = vector.load %arg1[%c0_56, %c8, %c0_57, %c0_58] : memref<1x9x8x32xbf16, #tpu.memory_space<vmem>>, vector<1x1x8x32xbf16>
    %50 = vector.shape_cast %49 : vector<1x1x8x32xbf16> to vector<8x32xbf16>
    %c8_59 = arith.constant 8 : index
    %c0_60 = arith.constant 0 : index
    %c0_61 = arith.constant 0 : index
    %51 = vector.load %arg2[%c8_59, %c0_60, %c0_61] : memref<9x32x64xbf16, #tpu.memory_space<vmem>>, vector<1x32x64xbf16>
    %52 = vector.shape_cast %51 : vector<1x32x64xbf16> to vector<32x64xbf16>
    %cst_62 = arith.constant dense<0.000000e+00> : vector<8x64xf32>
    %53 = tpu.matmul %50, %52, %cst_62 {dimension_numbers = #tpu.dot_dimension_numbers<[1], [0], [0], [1], [0, 0, 1, 1], [], []>} : vector<8x32xbf16>, vector<32x64xbf16>, vector<8x64xf32> -> vector<8x64xf32>
    %54 = arith.addf %48, %53 : vector<8x64xf32>
    %55 = vector.shape_cast %54 : vector<8x64xf32> to vector<1x8x64xf32>
    %cst_63 = arith.constant dense<0.000000e+00> : vector<1xf32>
    %56 = vector.multi_reduction <add>, %55, %cst_63 [1, 2] : vector<1x8x64xf32> to vector<1xf32>
    %57 = vector.shape_cast %56 : vector<1xf32> to vector<1x1x1xf32>
    %58 = vector.extract %57[0, 0, 0] : f32 from vector<1x1x1xf32>
    %59 = arith.mulf %54, %54 : vector<8x64xf32>
    %60 = vector.shape_cast %59 : vector<8x64xf32> to vector<1x8x64xf32>
    %cst_64 = arith.constant dense<0.000000e+00> : vector<1xf32>
    %61 = vector.multi_reduction <add>, %60, %cst_64 [1, 2] : vector<1x8x64xf32> to vector<1xf32>
    %62 = vector.shape_cast %61 : vector<1xf32> to vector<1x1x1xf32>
    %63 = vector.extract %62[0, 0, 0] : f32 from vector<1x1x1xf32>
    %cst_65 = arith.constant 5.120000e+02 : f32
    %64 = arith.divf %58, %cst_65 : f32
    %cst_66 = arith.constant 5.120000e+02 : f32
    %65 = arith.divf %63, %cst_66 : f32
    %66 = arith.mulf %64, %64 : f32
    %67 = arith.subf %65, %66 : f32
    %cst_67 = arith.constant 0.000000e+00 : f32
    %68 = arith.maximumf %67, %cst_67 : f32
    %69 = vector.broadcast %64 : f32 to vector<8x64xf32>
    %70 = arith.subf %54, %69 : vector<8x64xf32>
    %cst_68 = arith.constant 9.99999974E-6 : f32
    %71 = arith.addf %68, %cst_68 : f32
    %72 = math.rsqrt %71 : f32
    %73 = vector.broadcast %72 : f32 to vector<8x64xf32>
    %74 = arith.mulf %70, %73 : vector<8x64xf32>
    %c0_69 = arith.constant 0 : index
    %c0_70 = arith.constant 0 : index
    %75 = vector.load %arg3[%c0_69, %c0_70] : memref<1x64xf32, #tpu.memory_space<vmem>>, vector<1x64xf32>
    %76 = vector.broadcast %75 : vector<1x64xf32> to vector<8x64xf32>
    %77 = arith.mulf %74, %76 : vector<8x64xf32>
    %c0_71 = arith.constant 0 : index
    %c0_72 = arith.constant 0 : index
    %78 = vector.load %arg4[%c0_71, %c0_72] : memref<1x64xf32, #tpu.memory_space<vmem>>, vector<1x64xf32>
    %79 = vector.broadcast %78 : vector<1x64xf32> to vector<8x64xf32>
    %80 = arith.addf %77, %79 : vector<8x64xf32>
    %cst_73 = arith.constant 0.000000e+00 : f32
    %81 = vector.broadcast %cst_73 : f32 to vector<8x64xf32>
    %82 = arith.maximumf %80, %81 : vector<8x64xf32>
    %cst_74 = arith.constant 0.000000e+00 : f32
    %83 = vector.broadcast %cst_74 : f32 to vector<10x80xf32>
    %c0_75 = arith.constant 0 : index
    %c0_76 = arith.constant 0 : index
    %84 = vector.load %arg13[%c0_75, %c0_76] : memref<10x80xf32, #tpu.memory_space<vmem>>, vector<10x80xf32>
    tpu.vector_store %arg13[%c0_75, %c0_76], %83 {strides = array<i32>} : memref<10x80xf32, #tpu.memory_space<vmem>>, vector<10x80xf32>,
    %c1_77 = arith.constant 1 : index
    %c8_78 = arith.constant 8 : index
    %85 = vector.load %arg13[%c1_77, %c8_78] : memref<10x80xf32, #tpu.memory_space<vmem>>, vector<8x64xf32>
    tpu.vector_store %arg13[%c1_77, %c8_78], %82 {strides = array<i32>} : memref<10x80xf32, #tpu.memory_space<vmem>>, vector<8x64xf32>,
    %cst_79 = arith.constant 0.000000e+00 : f32
    %86 = vector.broadcast %cst_79 : f32 to vector<8x64xf32>
    %c0_80 = arith.constant 0 : index
    %c0_81 = arith.constant 0 : index
    %87 = vector.load %arg13[%c0_80, %c0_81] : memref<10x80xf32, #tpu.memory_space<vmem>>, vector<8x64xf32>
    %88 = arith.truncf %87 : vector<8x64xf32> to vector<8x64xbf16>
    %c0_82 = arith.constant 0 : index
    %c0_83 = arith.constant 0 : index
    %c0_84 = arith.constant 0 : index
    %89 = vector.load %arg5[%c0_82, %c0_83, %c0_84] : memref<9x64x64xbf16, #tpu.memory_space<vmem>>, vector<1x64x64xbf16>
    %90 = vector.shape_cast %89 : vector<1x64x64xbf16> to vector<64x64xbf16>
    %cst_85 = arith.constant dense<0.000000e+00> : vector<8x64xf32>
    %91 = tpu.matmul %88, %90, %cst_85 {dimension_numbers = #tpu.dot_dimension_numbers<[1], [0], [0], [1], [0, 0, 1, 1], [], []>} : vector<8x64xbf16>, vector<64x64xbf16>, vector<8x64xf32> -> vector<8x64xf32>
    %92 = arith.addf %86, %91 : vector<8x64xf32>
    %c0_86 = arith.constant 0 : index
    %c8_87 = arith.constant 8 : index
    %93 = vector.load %arg13[%c0_86, %c8_87] : memref<10x80xf32, #tpu.memory_space<vmem>>, vector<8x64xf32>
    %94 = arith.truncf %93 : vector<8x64xf32> to vector<8x64xbf16>
    %c1_88 = arith.constant 1 : index
    %c0_89 = arith.constant 0 : index
    %c0_90 = arith.constant 0 : index
    %95 = vector.load %arg5[%c1_88, %c0_89, %c0_90] : memref<9x64x64xbf16, #tpu.memory_space<vmem>>, vector<1x64x64xbf16>
    %96 = vector.shape_cast %95 : vector<1x64x64xbf16> to vector<64x64xbf16>
    %cst_91 = arith.constant dense<0.000000e+00> : vector<8x64xf32>
    %97 = tpu.matmul %94, %96, %cst_91 {dimension_numbers = #tpu.dot_dimension_numbers<[1], [0], [0], [1], [0, 0, 1, 1], [], []>} : vector<8x64xbf16>, vector<64x64xbf16>, vector<8x64xf32> -> vector<8x64xf32>
    %98 = arith.addf %92, %97 : vector<8x64xf32>
    %c0_92 = arith.constant 0 : index
    %c16 = arith.constant 16 : index
    %99 = vector.load %arg13[%c0_92, %c16] : memref<10x80xf32, #tpu.memory_space<vmem>>, vector<8x64xf32>
    %100 = arith.truncf %99 : vector<8x64xf32> to vector<8x64xbf16>
    %c2_93 = arith.constant 2 : index
    %c0_94 = arith.constant 0 : index
    %c0_95 = arith.constant 0 : index
    %101 = vector.load %arg5[%c2_93, %c0_94, %c0_95] : memref<9x64x64xbf16, #tpu.memory_space<vmem>>, vector<1x64x64xbf16>
    %102 = vector.shape_cast %101 : vector<1x64x64xbf16> to vector<64x64xbf16>
    %cst_96 = arith.constant dense<0.000000e+00> : vector<8x64xf32>
    %103 = tpu.matmul %100, %102, %cst_96 {dimension_numbers = #tpu.dot_dimension_numbers<[1], [0], [0], [1], [0, 0, 1, 1], [], []>} : vector<8x64xbf16>, vector<64x64xbf16>, vector<8x64xf32> -> vector<8x64xf32>
    %104 = arith.addf %98, %103 : vector<8x64xf32>
    %c1_97 = arith.constant 1 : index
    %c0_98 = arith.constant 0 : index
    %105 = vector.load %arg13[%c1_97, %c0_98] : memref<10x80xf32, #tpu.memory_space<vmem>>, vector<8x64xf32>
    %106 = arith.truncf %105 : vector<8x64xf32> to vector<8x64xbf16>
    %c3_99 = arith.constant 3 : index
    %c0_100 = arith.constant 0 : index
    %c0_101 = arith.constant 0 : index
    %107 = vector.load %arg5[%c3_99, %c0_100, %c0_101] : memref<9x64x64xbf16, #tpu.memory_space<vmem>>, vector<1x64x64xbf16>
    %108 = vector.shape_cast %107 : vector<1x64x64xbf16> to vector<64x64xbf16>
    %cst_102 = arith.constant dense<0.000000e+00> : vector<8x64xf32>
    %109 = tpu.matmul %106, %108, %cst_102 {dimension_numbers = #tpu.dot_dimension_numbers<[1], [0], [0], [1], [0, 0, 1, 1], [], []>} : vector<8x64xbf16>, vector<64x64xbf16>, vector<8x64xf32> -> vector<8x64xf32>
    %110 = arith.addf %104, %109 : vector<8x64xf32>
    %c1_103 = arith.constant 1 : index
    %c8_104 = arith.constant 8 : index
    %111 = vector.load %arg13[%c1_103, %c8_104] : memref<10x80xf32, #tpu.memory_space<vmem>>, vector<8x64xf32>
    %112 = arith.truncf %111 : vector<8x64xf32> to vector<8x64xbf16>
    %c4_105 = arith.constant 4 : index
    %c0_106 = arith.constant 0 : index
    %c0_107 = arith.constant 0 : index
    %113 = vector.load %arg5[%c4_105, %c0_106, %c0_107] : memref<9x64x64xbf16, #tpu.memory_space<vmem>>, vector<1x64x64xbf16>
    %114 = vector.shape_cast %113 : vector<1x64x64xbf16> to vector<64x64xbf16>
    %cst_108 = arith.constant dense<0.000000e+00> : vector<8x64xf32>
    %115 = tpu.matmul %112, %114, %cst_108 {dimension_numbers = #tpu.dot_dimension_numbers<[1], [0], [0], [1], [0, 0, 1, 1], [], []>} : vector<8x64xbf16>, vector<64x64xbf16>, vector<8x64xf32> -> vector<8x64xf32>
    %116 = arith.addf %110, %115 : vector<8x64xf32>
    %c1_109 = arith.constant 1 : index
    %c16_110 = arith.constant 16 : index
    %117 = vector.load %arg13[%c1_109, %c16_110] : memref<10x80xf32, #tpu.memory_space<vmem>>, vector<8x64xf32>
    %118 = arith.truncf %117 : vector<8x64xf32> to vector<8x64xbf16>
    %c5_111 = arith.constant 5 : index
    %c0_112 = arith.constant 0 : index
    %c0_113 = arith.constant 0 : index
    %119 = vector.load %arg5[%c5_111, %c0_112, %c0_113] : memref<9x64x64xbf16, #tpu.memory_space<vmem>>, vector<1x64x64xbf16>
    %120 = vector.shape_cast %119 : vector<1x64x64xbf16> to vector<64x64xbf16>
    %cst_114 = arith.constant dense<0.000000e+00> : vector<8x64xf32>
    %121 = tpu.matmul %118, %120, %cst_114 {dimension_numbers = #tpu.dot_dimension_numbers<[1], [0], [0], [1], [0, 0, 1, 1], [], []>} : vector<8x64xbf16>, vector<64x64xbf16>, vector<8x64xf32> -> vector<8x64xf32>
    %122 = arith.addf %116, %121 : vector<8x64xf32>
    %c2_115 = arith.constant 2 : index
    %c0_116 = arith.constant 0 : index
    %123 = vector.load %arg13[%c2_115, %c0_116] : memref<10x80xf32, #tpu.memory_space<vmem>>, vector<8x64xf32>
    %124 = arith.truncf %123 : vector<8x64xf32> to vector<8x64xbf16>
    %c6_117 = arith.constant 6 : index
    %c0_118 = arith.constant 0 : index
    %c0_119 = arith.constant 0 : index
    %125 = vector.load %arg5[%c6_117, %c0_118, %c0_119] : memref<9x64x64xbf16, #tpu.memory_space<vmem>>, vector<1x64x64xbf16>
    %126 = vector.shape_cast %125 : vector<1x64x64xbf16> to vector<64x64xbf16>
    %cst_120 = arith.constant dense<0.000000e+00> : vector<8x64xf32>
    %127 = tpu.matmul %124, %126, %cst_120 {dimension_numbers = #tpu.dot_dimension_numbers<[1], [0], [0], [1], [0, 0, 1, 1], [], []>} : vector<8x64xbf16>, vector<64x64xbf16>, vector<8x64xf32> -> vector<8x64xf32>
    %128 = arith.addf %122, %127 : vector<8x64xf32>
    %c2_121 = arith.constant 2 : index
    %c8_122 = arith.constant 8 : index
    %129 = vector.load %arg13[%c2_121, %c8_122] : memref<10x80xf32, #tpu.memory_space<vmem>>, vector<8x64xf32>
    %130 = arith.truncf %129 : vector<8x64xf32> to vector<8x64xbf16>
    %c7_123 = arith.constant 7 : index
    %c0_124 = arith.constant 0 : index
    %c0_125 = arith.constant 0 : index
    %131 = vector.load %arg5[%c7_123, %c0_124, %c0_125] : memref<9x64x64xbf16, #tpu.memory_space<vmem>>, vector<1x64x64xbf16>
    %132 = vector.shape_cast %131 : vector<1x64x64xbf16> to vector<64x64xbf16>
    %cst_126 = arith.constant dense<0.000000e+00> : vector<8x64xf32>
    %133 = tpu.matmul %130, %132, %cst_126 {dimension_numbers = #tpu.dot_dimension_numbers<[1], [0], [0], [1], [0, 0, 1, 1], [], []>} : vector<8x64xbf16>, vector<64x64xbf16>, vector<8x64xf32> -> vector<8x64xf32>
    %134 = arith.addf %128, %133 : vector<8x64xf32>
    %c2_127 = arith.constant 2 : index
    %c16_128 = arith.constant 16 : index
    %135 = vector.load %arg13[%c2_127, %c16_128] : memref<10x80xf32, #tpu.memory_space<vmem>>, vector<8x64xf32>
    %136 = arith.truncf %135 : vector<8x64xf32> to vector<8x64xbf16>
    %c8_129 = arith.constant 8 : index
    %c0_130 = arith.constant 0 : index
    %c0_131 = arith.constant 0 : index
    %137 = vector.load %arg5[%c8_129, %c0_130, %c0_131] : memref<9x64x64xbf16, #tpu.memory_space<vmem>>, vector<1x64x64xbf16>
    %138 = vector.shape_cast %137 : vector<1x64x64xbf16> to vector<64x64xbf16>
    %cst_132 = arith.constant dense<0.000000e+00> : vector<8x64xf32>
    %139 = tpu.matmul %136, %138, %cst_132 {dimension_numbers = #tpu.dot_dimension_numbers<[1], [0], [0], [1], [0, 0, 1, 1], [], []>} : vector<8x64xbf16>, vector<64x64xbf16>, vector<8x64xf32> -> vector<8x64xf32>
    %140 = arith.addf %134, %139 : vector<8x64xf32>
    %141 = vector.shape_cast %140 : vector<8x64xf32> to vector<1x8x64xf32>
    %cst_133 = arith.constant dense<0.000000e+00> : vector<1xf32>
    %142 = vector.multi_reduction <add>, %141, %cst_133 [1, 2] : vector<1x8x64xf32> to vector<1xf32>
    %143 = vector.shape_cast %142 : vector<1xf32> to vector<1x1x1xf32>
    %144 = vector.extract %143[0, 0, 0] : f32 from vector<1x1x1xf32>
    %145 = arith.mulf %140, %140 : vector<8x64xf32>
    %146 = vector.shape_cast %145 : vector<8x64xf32> to vector<1x8x64xf32>
    %cst_134 = arith.constant dense<0.000000e+00> : vector<1xf32>
    %147 = vector.multi_reduction <add>, %146, %cst_134 [1, 2] : vector<1x8x64xf32> to vector<1xf32>
    %148 = vector.shape_cast %147 : vector<1xf32> to vector<1x1x1xf32>
    %149 = vector.extract %148[0, 0, 0] : f32 from vector<1x1x1xf32>
    %cst_135 = arith.constant 5.120000e+02 : f32
    %150 = arith.divf %144, %cst_135 : f32
    %cst_136 = arith.constant 5.120000e+02 : f32
    %151 = arith.divf %149, %cst_136 : f32
    %152 = arith.mulf %150, %150 : f32
    %153 = arith.subf %151, %152 : f32
    %cst_137 = arith.constant 0.000000e+00 : f32
    %154 = arith.maximumf %153, %cst_137 : f32
    %155 = vector.broadcast %150 : f32 to vector<8x64xf32>
    %156 = arith.subf %140, %155 : vector<8x64xf32>
    %cst_138 = arith.constant 9.99999974E-6 : f32
    %157 = arith.addf %154, %cst_138 : f32
    %158 = math.rsqrt %157 : f32
    %159 = vector.broadcast %158 : f32 to vector<8x64xf32>
    %160 = arith.mulf %156, %159 : vector<8x64xf32>
    %c0_139 = arith.constant 0 : index
    %c0_140 = arith.constant 0 : index
    %161 = vector.load %arg6[%c0_139, %c0_140] : memref<1x64xf32, #tpu.memory_space<vmem>>, vector<1x64xf32>
    %162 = vector.broadcast %161 : vector<1x64xf32> to vector<8x64xf32>
    %163 = arith.mulf %160, %162 : vector<8x64xf32>
    %c0_141 = arith.constant 0 : index
    %c0_142 = arith.constant 0 : index
    %164 = vector.load %arg7[%c0_141, %c0_142] : memref<1x64xf32, #tpu.memory_space<vmem>>, vector<1x64xf32>
    %165 = vector.broadcast %164 : vector<1x64xf32> to vector<8x64xf32>
    %166 = arith.addf %163, %165 : vector<8x64xf32>
    %c0_143 = arith.constant 0 : index
    %c0_144 = arith.constant 0 : index
    %c0_145 = arith.constant 0 : index
    %167 = vector.load %arg8[%c0_143, %c0_144, %c0_145] : memref<1x8x32xbf16, #tpu.memory_space<vmem>>, vector<1x8x32xbf16>
    %168 = vector.shape_cast %167 : vector<1x8x32xbf16> to vector<8x32xbf16>
    %c0_146 = arith.constant 0 : index
    %c0_147 = arith.constant 0 : index
    %169 = vector.load %arg9[%c0_146, %c0_147] : memref<32x64xbf16, #tpu.memory_space<vmem>>, vector<32x64xbf16>
    %cst_148 = arith.constant dense<0.000000e+00> : vector<8x64xf32>
    %170 = tpu.matmul %168, %169, %cst_148 {dimension_numbers = #tpu.dot_dimension_numbers<[1], [0], [0], [1], [0, 0, 1, 1], [], []>} : vector<8x32xbf16>, vector<32x64xbf16>, vector<8x64xf32> -> vector<8x64xf32>
    %171 = vector.shape_cast %170 : vector<8x64xf32> to vector<1x8x64xf32>
    %cst_149 = arith.constant dense<0.000000e+00> : vector<1xf32>
    %172 = vector.multi_reduction <add>, %171, %cst_149 [1, 2] : vector<1x8x64xf32> to vector<1xf32>
    %173 = vector.shape_cast %172 : vector<1xf32> to vector<1x1x1xf32>
    %174 = vector.extract %173[0, 0, 0] : f32 from vector<1x1x1xf32>
    %175 = arith.mulf %170, %170 : vector<8x64xf32>
    %176 = vector.shape_cast %175 : vector<8x64xf32> to vector<1x8x64xf32>
    %cst_150 = arith.constant dense<0.000000e+00> : vector<1xf32>
    %177 = vector.multi_reduction <add>, %176, %cst_150 [1, 2] : vector<1x8x64xf32> to vector<1xf32>
    %178 = vector.shape_cast %177 : vector<1xf32> to vector<1x1x1xf32>
    %179 = vector.extract %178[0, 0, 0] : f32 from vector<1x1x1xf32>
    %cst_151 = arith.constant 5.120000e+02 : f32
    %180 = arith.divf %174, %cst_151 : f32
    %cst_152 = arith.constant 5.120000e+02 : f32
    %181 = arith.divf %179, %cst_152 : f32
    %182 = arith.mulf %180, %180 : f32
    %183 = arith.subf %181, %182 : f32
    %cst_153 = arith.constant 0.000000e+00 : f32
    %184 = arith.maximumf %183, %cst_153 : f32
    %185 = vector.broadcast %180 : f32 to vector<8x64xf32>
    %186 = arith.subf %170, %185 : vector<8x64xf32>
    %cst_154 = arith.constant 9.99999974E-6 : f32
    %187 = arith.addf %184, %cst_154 : f32
    %188 = math.rsqrt %187 : f32
    %189 = vector.broadcast %188 : f32 to vector<8x64xf32>
    %190 = arith.mulf %186, %189 : vector<8x64xf32>
    %c0_155 = arith.constant 0 : index
    %c0_156 = arith.constant 0 : index
    %191 = vector.load %arg10[%c0_155, %c0_156] : memref<1x64xf32, #tpu.memory_space<vmem>>, vector<1x64xf32>
    %192 = vector.broadcast %191 : vector<1x64xf32> to vector<8x64xf32>
    %193 = arith.mulf %190, %192 : vector<8x64xf32>
    %c0_157 = arith.constant 0 : index
    %c0_158 = arith.constant 0 : index
    %194 = vector.load %arg11[%c0_157, %c0_158] : memref<1x64xf32, #tpu.memory_space<vmem>>, vector<1x64xf32>
    %195 = vector.broadcast %194 : vector<1x64xf32> to vector<8x64xf32>
    %196 = arith.addf %193, %195 : vector<8x64xf32>
    %197 = arith.addf %166, %196 : vector<8x64xf32>
    %cst_159 = arith.constant 0.000000e+00 : f32
    %198 = vector.broadcast %cst_159 : f32 to vector<8x64xf32>
    %199 = arith.maximumf %197, %198 : vector<8x64xf32>
    %200 = arith.truncf %199 : vector<8x64xf32> to vector<8x64xbf16>
    %c0_160 = arith.constant 0 : index
    %c0_161 = arith.constant 0 : index
    %c0_162 = arith.constant 0 : index
    %201 = vector.load %arg12[%c0_160, %c0_161, %c0_162] : memref<1x8x64xbf16, #tpu.memory_space<vmem>>, vector<1x8x64xbf16>
    %202 = vector.shape_cast %201 : vector<1x8x64xbf16> to vector<8x64xbf16>
    %203 = vector.shape_cast %200 : vector<8x64xbf16> to vector<1x8x64xbf16>
    tpu.vector_store %arg12[%c0_160, %c0_161, %c0_162], %203 {strides = array<i32>} : memref<1x8x64xbf16, #tpu.memory_space<vmem>>, vector<1x8x64xbf16>,
    return
  }
  func.func @transform_0(%arg0: i32) -> (i32, i32, i32, i32) {
    %c0_i32 = arith.constant 0 : i32
    %c0_i32_0 = arith.constant 0 : i32
    %c0_i32_1 = arith.constant 0 : i32
    %c0_i32_2 = arith.constant 0 : i32
    return %arg0, %c0_i32, %c0_i32_0, %c0_i32_1 : i32, i32, i32, i32
  }
  func.func @transform_1(%arg0: i32) -> (i32, i32, i32) {
    %c0_i32 = arith.constant 0 : i32
    %c0_i32_0 = arith.constant 0 : i32
    %c0_i32_1 = arith.constant 0 : i32
    %c0_i32_2 = arith.constant 0 : i32
    return %c0_i32, %c0_i32_0, %c0_i32_1 : i32, i32, i32
  }
  func.func @transform_2(%arg0: i32) -> (i32, i32) {
    %c0_i32 = arith.constant 0 : i32
    %c0_i32_0 = arith.constant 0 : i32
    %c0_i32_1 = arith.constant 0 : i32
    return %c0_i32, %c0_i32_0 : i32, i32
  }
  func.func @transform_3(%arg0: i32) -> (i32, i32) {
    %c0_i32 = arith.constant 0 : i32
    %c0_i32_0 = arith.constant 0 : i32
    %c0_i32_1 = arith.constant 0 : i32
    return %c0_i32, %c0_i32_0 : i32, i32
  }
  func.func @transform_4(%arg0: i32) -> (i32, i32, i32) {
    %c0_i32 = arith.constant 0 : i32
    %c0_i32_0 = arith.constant 0 : i32
    %c0_i32_1 = arith.constant 0 : i32
    %c0_i32_2 = arith.constant 0 : i32
    return %c0_i32, %c0_i32_0, %c0_i32_1 : i32, i32, i32
  }
  func.func @transform_5(%arg0: i32) -> (i32, i32) {
    %c0_i32 = arith.constant 0 : i32
    %c0_i32_0 = arith.constant 0 : i32
    %c0_i32_1 = arith.constant 0 : i32
    return %c0_i32, %c0_i32_0 : i32, i32
  }
  func.func @transform_6(%arg0: i32) -> (i32, i32) {
    %c0_i32 = arith.constant 0 : i32
    %c0_i32_0 = arith.constant 0 : i32
    %c0_i32_1 = arith.constant 0 : i32
    return %c0_i32, %c0_i32_0 : i32, i32
  }
  func.func @transform_7(%arg0: i32) -> (i32, i32, i32) {
    %c0_i32 = arith.constant 0 : i32
    %c0_i32_0 = arith.constant 0 : i32
    %c0_i32_1 = arith.constant 0 : i32
    return %arg0, %c0_i32, %c0_i32_0 : i32, i32, i32
  }
  func.func @transform_8(%arg0: i32) -> (i32, i32) {
    %c0_i32 = arith.constant 0 : i32
    %c0_i32_0 = arith.constant 0 : i32
    %c0_i32_1 = arith.constant 0 : i32
    return %c0_i32, %c0_i32_0 : i32, i32
  }
  func.func @transform_9(%arg0: i32) -> (i32, i32) {
    %c0_i32 = arith.constant 0 : i32
    %c0_i32_0 = arith.constant 0 : i32
    %c0_i32_1 = arith.constant 0 : i32
    return %c0_i32, %c0_i32_0 : i32, i32
  }
  func.func @transform_10(%arg0: i32) -> (i32, i32) {
    %c0_i32 = arith.constant 0 : i32
    %c0_i32_0 = arith.constant 0 : i32
    %c0_i32_1 = arith.constant 0 : i32
    return %c0_i32, %c0_i32_0 : i32, i32
  }
  func.func @transform_11(%arg0: i32) -> (i32, i32, i32) {
    %c0_i32 = arith.constant 0 : i32
    %c0_i32_0 = arith.constant 0 : i32
    %c0_i32_1 = arith.constant 0 : i32
    return %arg0, %c0_i32, %c0_i32_0 : i32, i32, i32
  }
}

</mosaic_0001>

<llo_original>
// kernel: tpu_custom_call.1
$region0: #{tpu_custom_call.1}
  #allocation0 [shape = 'u32[]', space=smem, size = 0x4, offset = 0x4, fixed_abs, tag = 'smem constant byte address 0x4 - core index']
  #allocation1 [shape = 'u32[144,128]{1,0:T(1,128)}', space=vmem, size = 0x12000, scoped, tag = 'internal scratch']
  #allocation2 [shape = 'f32[10,80]{1,0:T(8,128)}', space=vmem, size = 0x2000, scoped, tag = 'scratch operand']
  %s0 = inlined_call_operand.hbm [shape: bf16[2,9,8,32], index: 0, kind: input, shape index: {}]
  %s1 = inlined_call_operand.hbm [shape: bf16[9,32,64], index: 1, kind: input, shape index: {}]
  %s2 = inlined_call_operand.vmem [shape: f32[1,64], index: 2, kind: input, shape index: {}]
  %s3 = inlined_call_operand.vmem [shape: f32[1,64], index: 3, kind: input, shape index: {}]
  %s4 = inlined_call_operand.hbm [shape: bf16[9,64,64], index: 4, kind: input, shape index: {}]
  %s5 = inlined_call_operand.vmem [shape: f32[1,64], index: 5, kind: input, shape index: {}]
  %s6 = inlined_call_operand.vmem [shape: f32[1,64], index: 6, kind: input, shape index: {}]
  %s7 = inlined_call_operand.vmem [shape: bf16[2,8,32], index: 7, kind: input, shape index: {}]
  %s8 = inlined_call_operand.vmem [shape: bf16[32,64], index: 8, kind: input, shape index: {}]
  %s9 = inlined_call_operand.vmem [shape: f32[1,64], index: 9, kind: input, shape index: {}]
  %s10 = inlined_call_operand.vmem [shape: f32[1,64], index: 10, kind: input, shape index: {}]
  %s11 = inlined_call_operand.hbm [shape: bf16[2,8,64], index: 11, kind: output, shape index: {}]
  %s12 = sld [smem:[#allocation0]]
  $region89: #{tpu_custom_call.1} parent=0
    _
  %s14 = ssub.s32 1, %s12
  %s15 = scalar_select 0, %s14, %s12
  $region1: #{tpu_custom_call.1} parent=0
    #allocation3 [shape = 'u8[36864]{0}', space=vmem, size = 0x9000, scoped, tag = 'input window, operand 0']
    #allocation4 [shape = 's32[2]{0}', space=sflag, size = 0x8, scoped, tag = 'scoped memory for tpu_custom_call.1']
    #allocation5 [shape = 's32[2]{0}', space=sflag, size = 0x8, scoped, tag = 'scoped memory for tpu_custom_call.1']
    #allocation6 [shape = 'u8[73728]{0}', space=vmem, size = 0x12000, scoped, tag = 'input window, operand 1, single buffered']
    #allocation7 [shape = 's32[1]{0}', space=sflag, size = 0x4, scoped, tag = 'scoped memory for tpu_custom_call.1']
    #allocation8 [shape = 'u8[147456]{0}', space=vmem, size = 0x24000, scoped, tag = 'input window, operand 4, single buffered']
    #allocation9 [shape = 'u8[4096]{0}', space=vmem, size = 0x1000, scoped, tag = 'output window, operand 0']
    %16 = vsyncpa [#allocation4], 0
    %s17 = scalar_lea.sflag [#allocation4], 1
    %18 = vsyncpa %s17, 0
    %19 = vsyncpa [#allocation7], 0
    %20 = vsyncpa [#allocation5], 0
    %s21 = scalar_lea.sflag [#allocation5], 1
    %22 = vsyncpa %s21, 0
    loop: start=0, step=1, limit=4
    $region2: #{tpu_custom_call.1} parent=1 // loop_pre_header
      _
    $region3: #{tpu_custom_call.1} parent=1 // loop_header
      %s24 = sphi 0, %s28
      %p25 = scmp.ge.s32.totalorder %s24, 4
      %s34 = sphi 0, %s36
      %s37 = sphi 0, %s34
      %s38 = sphi 0, %s37
      %s54 = sphi 0, %s38
      %s58 = sphi 0, %s58
      %s60 = sphi 0, %s58
      %s61 = sphi 0, %s60
      %s75 = sphi 0, %s61
      %s79 = sphi 0, %s79
      %s81 = sphi 0, %s79
      %s82 = sphi 0, %s81
      %s96 = sphi 0, %s82
      %s100 = sphi 0, %s100
      %s102 = sphi 0, %s100
      %s103 = sphi 0, %s102
      %s117 = sphi 0, %s103
      %s121 = sphi 0, %s121
      %s123 = sphi 0, %s121
      %s124 = sphi 0, %s123
      %s138 = sphi 0, %s124
      %s142 = sphi 0, %s142
      %s144 = sphi 0, %s142
      %s145 = sphi 0, %s144
      %s159 = sphi 0, %s145
      %s163 = sphi 0, %s163
      %s165 = sphi 0, %s163
      %s166 = sphi 0, %s165
      %s180 = sphi 0, %s166
      %s186 = sphi 0, %s188
      %s189 = sphi 0, %s186
      %s190 = sphi 0, %s189
      %s206 = sphi 0, %s190
      %s210 = sphi 0, %s210
      %s212 = sphi 0, %s210
      %s213 = sphi 0, %s212
      %s227 = sphi 0, %s213
      %s231 = sphi 0, %s231
      %s233 = sphi 0, %s231
      %s234 = sphi 0, %s233
      %s248 = sphi 0, %s234
      %s252 = sphi 0, %s252
      %s254 = sphi 0, %s252
      %s255 = sphi 0, %s254
      %s269 = sphi 0, %s255
      %s275 = sphi 0, %s277
      %s278 = sphi 0, %s275
      %s279 = sphi 0, %s278
      %s295 = sphi 0, %s279
    $region4: #{tpu_custom_call.1} parent=1 // loop_header_branch
      %27 = sbr.rel (%p25) target = $region8
    $region5: #{tpu_custom_call.1} parent=1 // loop_body
      %s29 = ssub.s32 %s24, 1
      %s30 = ssub.s32 %s24, 2
      %s31 = sadd.s32 %s24, 1
      %s32 = ssub.s32 %s24, %s31
      %p33 = scmp.eq.s32.totalorder %s32, 0
      %s35 = sadd.s32 %s34, 1
      %s36 = scalar_select %p33, %s34, %s35
      %p39 = pneg %p33
      %p40 = scmp.eq.s32.totalorder %s24, 1
      %p41 = por %p39, %p40
      %p42 = scmp.ne.s32.totalorder %s34, %s37
      %p43 = scmp.eq.s32.totalorder %s24, 0
      %p44 = por %p42, %p43
      %p45 = scmp.ne.s32.totalorder %s34, %s37
      %p46 = scmp.eq.s32.totalorder %s29, 1
      %p47 = por %p45, %p46
      %p48 = scmp.ne.s32.totalorder %s37, %s38
      %p49 = scmp.eq.s32.totalorder %s29, 0
      %p50 = por %p48, %p49
      %p51 = scmp.ne.s32.totalorder %s37, %s38
      %p52 = scmp.eq.s32.totalorder %s30, 1
      %p53 = por %p51, %p52
      %p55 = scmp.ne.s32.totalorder %s38, %s54
      %p56 = scmp.eq.s32.totalorder %s30, 0
      %p57 = por %p55, %p56
      %s59 = sadd.s32 %s58, 1
      %p62 = scmp.eq.s32.totalorder %s24, 1
      %p63 = scmp.ne.s32.totalorder %s58, %s60
      %p64 = scmp.eq.s32.totalorder %s24, 0
      %p65 = por %p63, %p64
      %p66 = scmp.ne.s32.totalorder %s58, %s60
      %p67 = scmp.eq.s32.totalorder %s29, 1
      %p68 = por %p66, %p67
      %p69 = scmp.ne.s32.totalorder %s60, %s61
      %p70 = scmp.eq.s32.totalorder %s29, 0
      %p71 = por %p69, %p70
      %p72 = scmp.ne.s32.totalorder %s60, %s61
      %p73 = scmp.eq.s32.totalorder %s30, 1
      %p74 = por %p72, %p73
      %p76 = scmp.ne.s32.totalorder %s61, %s75
      %p77 = scmp.eq.s32.totalorder %s30, 0
      %p78 = por %p76, %p77
      %s80 = sadd.s32 %s79, 1
      %p83 = scmp.eq.s32.totalorder %s24, 1
      %p84 = scmp.ne.s32.totalorder %s79, %s81
      %p85 = scmp.eq.s32.totalorder %s24, 0
      %p86 = por %p84, %p85
      %p87 = scmp.ne.s32.totalorder %s79, %s81
      %p88 = scmp.eq.s32.totalorder %s29, 1
      %p89 = por %p87, %p88
      %p90 = scmp.ne.s32.totalorder %s81, %s82
      %p91 = scmp.eq.s32.totalorder %s29, 0
      %p92 = por %p90, %p91
      %p93 = scmp.ne.s32.totalorder %s81, %s82
      %p94 = scmp.eq.s32.totalorder %s30, 1
      %p95 = por %p93, %p94
      %p97 = scmp.ne.s32.totalorder %s82, %s96
      %p98 = scmp.eq.s32.totalorder %s30, 0
      %p99 = por %p97, %p98
      %s101 = sadd.s32 %s100, 1
      %p104 = scmp.eq.s32.totalorder %s24, 1
      %p105 = scmp.ne.s32.totalorder %s100, %s102
      %p106 = scmp.eq.s32.totalorder %s24, 0
      %p107 = por %p105, %p106
      %p108 = scmp.ne.s32.totalorder %s100, %s102
      %p109 = scmp.eq.s32.totalorder %s29, 1
      %p110 = por %p108, %p109
      %p111 = scmp.ne.s32.totalorder %s102, %s103
      %p112 = scmp.eq.s32.totalorder %s29, 0
      %p113 = por %p111, %p112
      %p114 = scmp.ne.s32.totalorder %s102, %s103
      %p115 = scmp.eq.s32.totalorder %s30, 1
      %p116 = por %p114, %p115
      %p118 = scmp.ne.s32.totalorder %s103, %s117
      %p119 = scmp.eq.s32.totalorder %s30, 0
      %p120 = por %p118, %p119
      %s122 = sadd.s32 %s121, 1
      %p125 = scmp.eq.s32.totalorder %s24, 1
      %p126 = scmp.ne.s32.totalorder %s121, %s123
      %p127 = scmp.eq.s32.totalorder %s24, 0
      %p128 = por %p126, %p127
      %p129 = scmp.ne.s32.totalorder %s121, %s123
      %p130 = scmp.eq.s32.totalorder %s29, 1
      %p131 = por %p129, %p130
      %p132 = scmp.ne.s32.totalorder %s123, %s124
      %p133 = scmp.eq.s32.totalorder %s29, 0
      %p134 = por %p132, %p133
      %p135 = scmp.ne.s32.totalorder %s123, %s124
      %p136 = scmp.eq.s32.totalorder %s30, 1
      %p137 = por %p135, %p136
      %p139 = scmp.ne.s32.totalorder %s124, %s138
      %p140 = scmp.eq.s32.totalorder %s30, 0
      %p141 = por %p139, %p140
      %s143 = sadd.s32 %s142, 1
      %p146 = scmp.eq.s32.totalorder %s24, 1
      %p147 = scmp.ne.s32.totalorder %s142, %s144
      %p148 = scmp.eq.s32.totalorder %s24, 0
      %p149 = por %p147, %p148
      %p150 = scmp.ne.s32.totalorder %s142, %s144
      %p151 = scmp.eq.s32.totalorder %s29, 1
      %p152 = por %p150, %p151
      %p153 = scmp.ne.s32.totalorder %s144, %s145
      %p154 = scmp.eq.s32.totalorder %s29, 0
      %p155 = por %p153, %p154
      %p156 = scmp.ne.s32.totalorder %s144, %s145
      %p157 = scmp.eq.s32.totalorder %s30, 1
      %p158 = por %p156, %p157
      %p160 = scmp.ne.s32.totalorder %s145, %s159
      %p161 = scmp.eq.s32.totalorder %s30, 0
      %p162 = por %p160, %p161
      %s164 = sadd.s32 %s163, 1
      %p167 = scmp.eq.s32.totalorder %s24, 1
      %p168 = scmp.ne.s32.totalorder %s163, %s165
      %p169 = scmp.eq.s32.totalorder %s24, 0
      %p170 = por %p168, %p169
      %p171 = scmp.ne.s32.totalorder %s163, %s165
      %p172 = scmp.eq.s32.totalorder %s29, 1
      %p173 = por %p171, %p172
      %p174 = scmp.ne.s32.totalorder %s165, %s166
      %p175 = scmp.eq.s32.totalorder %s29, 0
      %p176 = por %p174, %p175
      %p177 = scmp.ne.s32.totalorder %s165, %s166
      %p178 = scmp.eq.s32.totalorder %s30, 1
      %p179 = por %p177, %p178
      %p181 = scmp.ne.s32.totalorder %s166, %s180
      %p182 = scmp.eq.s32.totalorder %s30, 0
      %p183 = por %p181, %p182
      %s184 = ssub.s32 %s24, %s31
      %p185 = scmp.eq.s32.totalorder %s184, 0
      %s187 = sadd.s32 %s186, 1
      %s188 = scalar_select %p185, %s186, %s187
      %p191 = pneg %p185
      %p192 = scmp.eq.s32.totalorder %s24, 1
      %p193 = por %p191, %p192
      %p194 = scmp.ne.s32.totalorder %s186, %s189
      %p195 = scmp.eq.s32.totalorder %s24, 0
      %p196 = por %p194, %p195
      %p197 = scmp.ne.s32.totalorder %s186, %s189
      %p198 = scmp.eq.s32.totalorder %s29, 1
      %p199 = por %p197, %p198
      %p200 = scmp.ne.s32.totalorder %s189, %s190
      %p201 = scmp.eq.s32.totalorder %s29, 0
      %p202 = por %p200, %p201
      %p203 = scmp.ne.s32.totalorder %s189, %s190
      %p204 = scmp.eq.s32.totalorder %s30, 1
      %p205 = por %p203, %p204
      %p207 = scmp.ne.s32.totalorder %s190, %s206
      %p208 = scmp.eq.s32.totalorder %s30, 0
      %p209 = por %p207, %p208
      %s211 = sadd.s32 %s210, 1
      %p214 = scmp.eq.s32.totalorder %s24, 1
      %p215 = scmp.ne.s32.totalorder %s210, %s212
      %p216 = scmp.eq.s32.totalorder %s24, 0
      %p217 = por %p215, %p216
      %p218 = scmp.ne.s32.totalorder %s210, %s212
      %p219 = scmp.eq.s32.totalorder %s29, 1
      %p220 = por %p218, %p219
      %p221 = scmp.ne.s32.totalorder %s212, %s213
      %p222 = scmp.eq.s32.totalorder %s29, 0
      %p223 = por %p221, %p222
      %p224 = scmp.ne.s32.totalorder %s212, %s213
      %p225 = scmp.eq.s32.totalorder %s30, 1
      %p226 = por %p224, %p225
      %p228 = scmp.ne.s32.totalorder %s213, %s227
      %p229 = scmp.eq.s32.totalorder %s30, 0
      %p230 = por %p228, %p229
      %s232 = sadd.s32 %s231, 1
      %p235 = scmp.eq.s32.totalorder %s24, 1
      %p236 = scmp.ne.s32.totalorder %s231, %s233
      %p237 = scmp.eq.s32.totalorder %s24, 0
      %p238 = por %p236, %p237
      %p239 = scmp.ne.s32.totalorder %s231, %s233
      %p240 = scmp.eq.s32.totalorder %s29, 1
      %p241 = por %p239, %p240
      %p242 = scmp.ne.s32.totalorder %s233, %s234
      %p243 = scmp.eq.s32.totalorder %s29, 0
      %p244 = por %p242, %p243
      %p245 = scmp.ne.s32.totalorder %s233, %s234
      %p246 = scmp.eq.s32.totalorder %s30, 1
      %p247 = por %p245, %p246
      %p249 = scmp.ne.s32.totalorder %s234, %s248
      %p250 = scmp.eq.s32.totalorder %s30, 0
      %p251 = por %p249, %p250
      %s253 = sadd.s32 %s252, 1
      %p256 = scmp.eq.s32.totalorder %s24, 1
      %p257 = scmp.ne.s32.totalorder %s252, %s254
      %p258 = scmp.eq.s32.totalorder %s24, 0
      %p259 = por %p257, %p258
      %p260 = scmp.ne.s32.totalorder %s252, %s254
      %p261 = scmp.eq.s32.totalorder %s29, 1
      %p262 = por %p260, %p261
      %p263 = scmp.ne.s32.totalorder %s254, %s255
      %p264 = scmp.eq.s32.totalorder %s29, 0
      %p265 = por %p263, %p264
      %p266 = scmp.ne.s32.totalorder %s254, %s255
      %p267 = scmp.eq.s32.totalorder %s30, 1
      %p268 = por %p266, %p267
      %p270 = scmp.ne.s32.totalorder %s255, %s269
      %p271 = scmp.eq.s32.totalorder %s30, 0
      %p272 = por %p270, %p271
      %s273 = ssub.s32 %s24, %s31
      %p274 = scmp.eq.s32.totalorder %s273, 0
      %s276 = sadd.s32 %s275, 1
      %s277 = scalar_select %p274, %s275, %s276
      %p280 = pneg %p274
      %p281 = scmp.eq.s32.totalorder %s24, 1
      %p282 = por %p280, %p281
      %p283 = scmp.ne.s32.totalorder %s275, %s278
      %p284 = scmp.eq.s32.totalorder %s24, 0
      %p285 = por %p283, %p284
      %p286 = scmp.ne.s32.totalorder %s275, %s278
      %p287 = scmp.eq.s32.totalorder %s29, 1
      %p288 = por %p286, %p287
      %p289 = scmp.ne.s32.totalorder %s278, %s279
      %p290 = scmp.eq.s32.totalorder %s29, 0
      %p291 = por %p289, %p290
      %p292 = scmp.ne.s32.totalorder %s278, %s279
      %p293 = scmp.eq.s32.totalorder %s30, 1
      %p294 = por %p292, %p293
      %p296 = scmp.ne.s32.totalorder %s279, %s295
      %p297 = scmp.eq.s32.totalorder %s30, 0
      %p298 = por %p296, %p297
      %p299 = scmp.le.s32.totalorder 1, %s24
      %p300 = scmp.lt.s32.totalorder %s24, 3
      %p301 = pnand %p299, %p300
      %p302 = pneg %p301
      // Predicated region
      $region9: #{tpu_custom_call.1} parent=5 // pred_check
        _
      $region10: #{tpu_custom_call.1} parent=5 // pred_check_branch
        %304 = sbr.rel (%p301) target = $region12
      $region11: #{tpu_custom_call.1} parent=5 // pred_region
        %s305 = ssub.s32 %s24, 1
        // Predicated region
        $region13: #{tpu_custom_call.1} parent=11 // pred_check
          %p306 = pneg %p71
        $region14: #{tpu_custom_call.1} parent=11 // pred_check_branch
          %308 = sbr.rel (%p306) target = $region16
        $region15: #{tpu_custom_call.1} parent=11 // pred_region
          %s310 = ssub.s32 2304, 2304
          %311 = vsyncadd [#allocation7], %s310
          %s312 = sshll.u32 [#allocation6], 4
          %s313 = int_to_ptr.vmem [resolvable:$true] %s312
          %318 = dma.hbm_to_vmem [thread:$0]  %s1, 2304, %s313, [#allocation7], 64, 64, 4
        $region16: #{tpu_custom_call.1} parent=11 // pred_fallthru
          _
        // Predicated region
        $region17: #{tpu_custom_call.1} parent=11 // pred_check
          %p319 = pneg %p92
        $region18: #{tpu_custom_call.1} parent=11 // pred_check_branch
          %321 = sbr.rel (%p319) target = $region20
        $region19: #{tpu_custom_call.1} parent=11 // pred_region
          _
        $region20: #{tpu_custom_call.1} parent=11 // pred_fallthru
          _
        // Predicated region
        $region21: #{tpu_custom_call.1} parent=11 // pred_check
          %p322 = pneg %p113
        $region22: #{tpu_custom_call.1} parent=11 // pred_check_branch
          %324 = sbr.rel (%p322) target = $region24
        $region23: #{tpu_custom_call.1} parent=11 // pred_region
          _
        $region24: #{tpu_custom_call.1} parent=11 // pred_fallthru
          _
        // Predicated region
        $region25: #{tpu_custom_call.1} parent=11 // pred_check
          %p325 = pneg %p134
        $region26: #{tpu_custom_call.1} parent=11 // pred_check_branch
          %327 = sbr.rel (%p325) target = $region28
        $region27: #{tpu_custom_call.1} parent=11 // pred_region
          %s329 = ssub.s32 4608, 4608
          %330 = vsyncadd [#allocation7], %s329
          %s331 = sshll.u32 [#allocation8], 4
          %s332 = int_to_ptr.vmem [resolvable:$true] %s331
          %337 = dma.hbm_to_vmem [thread:$0]  %s4, 4608, %s332, [#allocation7], 64, 64, 4
        $region28: #{tpu_custom_call.1} parent=11 // pred_fallthru
          _
        // Predicated region
        $region29: #{tpu_custom_call.1} parent=11 // pred_check
          %p338 = pneg %p155
        $region30: #{tpu_custom_call.1} parent=11 // pred_check_branch
          %340 = sbr.rel (%p338) target = $region32
        $region31: #{tpu_custom_call.1} parent=11 // pred_region
          _
        $region32: #{tpu_custom_call.1} parent=11 // pred_fallthru
          _
        // Predicated region
        $region33: #{tpu_custom_call.1} parent=11 // pred_check
          %p341 = pneg %p176
        $region34: #{tpu_custom_call.1} parent=11 // pred_check_branch
          %343 = sbr.rel (%p341) target = $region36
        $region35: #{tpu_custom_call.1} parent=11 // pred_region
          _
        $region36: #{tpu_custom_call.1} parent=11 // pred_fallthru
          _
        // Predicated region
        $region37: #{tpu_custom_call.1} parent=11 // pred_check
          %p344 = pneg %p223
        $region38: #{tpu_custom_call.1} parent=11 // pred_check_branch
          %346 = sbr.rel (%p344) target = $region40
        $region39: #{tpu_custom_call.1} parent=11 // pred_region
          _
        $region40: #{tpu_custom_call.1} parent=11 // pred_fallthru
          _
        // Predicated region
        $region41: #{tpu_custom_call.1} parent=11 // pred_check
          %p347 = pneg %p244
        $region42: #{tpu_custom_call.1} parent=11 // pred_check_branch
          %349 = sbr.rel (%p347) target = $region44
        $region43: #{tpu_custom_call.1} parent=11 // pred_region
          _
        $region44: #{tpu_custom_call.1} parent=11 // pred_fallthru
          _
        // Predicated region
        $region45: #{tpu_custom_call.1} parent=11 // pred_check
          %p350 = pneg %p265
        $region46: #{tpu_custom_call.1} parent=11 // pred_check_branch
          %352 = sbr.rel (%p350) target = $region48
        $region47: #{tpu_custom_call.1} parent=11 // pred_region
          _
        $region48: #{tpu_custom_call.1} parent=11 // pred_fallthru
          _
      $region12: #{tpu_custom_call.1} parent=5 // pred_fallthru
        _
      %p353 = scmp.lt.s32.totalorder %s24, 2
      // Predicated region
      $region49: #{tpu_custom_call.1} parent=5 // pred_check
        %p354 = pneg %p353
      $region50: #{tpu_custom_call.1} parent=5 // pred_check_branch
        %356 = sbr.rel (%p354) target = $region52
      $region51: #{tpu_custom_call.1} parent=5 // pred_region
        // Predicated region
        $region53: #{tpu_custom_call.1} parent=51 // pred_check
          %p357 = pneg %p44
        $region54: #{tpu_custom_call.1} parent=51 // pred_check_branch
          %359 = sbr.rel (%p357) target = $region56
        $region55: #{tpu_custom_call.1} parent=51 // pred_region
          %s360 = sand.u32 %s34, 1
          %s361 = scalar_lea.sflag [#allocation4], %s360
          %s362 = sand.u32 %s34, 1
          %s363 = smul.addr %s362, 36
          %s364 = scalar_lea.vmem [#allocation3], %s363
          %s366 = ssub.s32 576, 576
          %367 = vsyncadd %s361, %s366
          %s368 = smul.addr %s24, 9
          %s369 = smul.addr %s368, 64
          %s370 = scalar_lea.hbm %s0, %s369
          %s371 = sshll.u32 %s364, 4
          %s372 = int_to_ptr.vmem [resolvable:$true] %s371
          %377 = dma.hbm_to_vmem [thread:$0]  %s370, 576, %s372, %s361, 64, 64, 4
        $region56: #{tpu_custom_call.1} parent=51 // pred_fallthru
          _
        // Predicated region
        $region57: #{tpu_custom_call.1} parent=51 // pred_check
          %p378 = pneg %p196
        $region58: #{tpu_custom_call.1} parent=51 // pred_check_branch
          %380 = sbr.rel (%p378) target = $region60
        $region59: #{tpu_custom_call.1} parent=51 // pred_region
          %p381 = scmp.lt.s32.totalorder %s24, 1
          %s382 = scalar_select %p381, %s24, 1
          %s383 = smul.addr %s382, 4
          %s384 = scalar_lea.vmem %s7, %s383
        $region60: #{tpu_custom_call.1} parent=51 // pred_fallthru
          _
      $region52: #{tpu_custom_call.1} parent=5 // pred_fallthru
        _
      %p385 = scmp.le.s32.totalorder 1, %s24
      %p386 = scmp.lt.s32.totalorder %s24, 3
      %p387 = pnand %p385, %p386
      %p388 = pneg %p387
      // Predicated region
      $region61: #{tpu_custom_call.1} parent=5 // pred_check
        _
      $region62: #{tpu_custom_call.1} parent=5 // pred_check_branch
        %390 = sbr.rel (%p387) target = $region64
      $region63: #{tpu_custom_call.1} parent=5 // pred_region
        %s391 = ssub.s32 %s24, 1
        %s392 = sand.u32 %s37, 1
        %s393 = scalar_lea.sflag [#allocation4], %s392
        %s394 = sand.u32 %s37, 1
        %s395 = smul.addr %s394, 36
        %s396 = scalar_lea.vmem [#allocation3], %s395
        // Predicated region
        $region65: #{tpu_custom_call.1} parent=63 // pred_check
          %p397 = pneg %p50
        $region66: #{tpu_custom_call.1} parent=63 // pred_check_branch
          %399 = sbr.rel (%p397) target = $region68
        $region67: #{tpu_custom_call.1} parent=63 // pred_region
          %400 = dma.done %s393, 576
        $region68: #{tpu_custom_call.1} parent=63 // pred_fallthru
          _
        // Predicated region
        $region69: #{tpu_custom_call.1} parent=63 // pred_check
          %p401 = pneg %p71
        $region70: #{tpu_custom_call.1} parent=63 // pred_check_branch
          %403 = sbr.rel (%p401) target = $region72
        $region71: #{tpu_custom_call.1} parent=63 // pred_region
          %404 = dma.done [#allocation7], 2304
        $region72: #{tpu_custom_call.1} parent=63 // pred_fallthru
          _
        // Predicated region
        $region73: #{tpu_custom_call.1} parent=63 // pred_check
          %p405 = pneg %p134
        $region74: #{tpu_custom_call.1} parent=63 // pred_check_branch
          %407 = sbr.rel (%p405) target = $region76
        $region75: #{tpu_custom_call.1} parent=63 // pred_region
          %408 = dma.done [#allocation7], 4608
        $region76: #{tpu_custom_call.1} parent=63 // pred_fallthru
          _
        %s409 = sand.u32 %s37, 1
        %s410 = scalar_lea.sflag [#allocation4], %s409
        %s411 = sand.u32 %s37, 1
        %s412 = smul.addr %s411, 36
        %s413 = scalar_lea.vmem [#allocation3], %s412
        %p414 = pneg %p50
        %p415 = pneg %p47
        %p416 = pneg %p71
        %p417 = pneg %p68
        %p418 = pneg %p92
        %p419 = pneg %p89
        %p420 = pneg %p113
        %p421 = pneg %p110
        %p422 = pneg %p134
        %p423 = pneg %p131
        %p424 = pneg %p155
        %p425 = pneg %p152
        %p426 = pneg %p176
        %p427 = pneg %p173
        %p428 = scmp.lt.s32.totalorder %s29, 1
        %s429 = scalar_select %p428, %s29, 1
        %s430 = smul.addr %s429, 4
        %s431 = scalar_lea.vmem %s7, %s430
        %p432 = pneg %p202
        %p433 = pneg %p199
        %p434 = pneg %p223
        %p435 = pneg %p220
        %p436 = pneg %p244
        %p437 = pneg %p241
        %p438 = pneg %p265
        %p439 = pneg %p262
        %p440 = pneg %p291
        %p441 = pneg %p288
        %s442 = sand.u32 %s278, 1
        %s443 = scalar_lea.sflag [#allocation5], %s442
        %s444 = sand.u32 %s278, 1
        %s445 = smul.addr %s444, 4
        %s446 = scalar_lea.vmem [#allocation9], %s445
        %p447 = scmp.lt.s32.totalorder %s29, 1
        %s448 = scalar_select %p447, %s29, 1
        %s449 = smul.addr %s448, 4
        %s450 = scalar_lea.vmem %s7, %s449
        %v452 = vld [vmem:[%s396] sm:$0xf]
        %v453 = vld [vmem:[#allocation6] sm:$0xf]
        %v454 = vld [vmem:[#allocation6 + $0x4] sm:$0xf]
        %v455 = vld [vmem:[#allocation6 + $0x8] sm:$0xf]
        %v456 = vld [vmem:[#allocation6 + $0xc] sm:$0xf]
        %s457 = scalar_lea.vmem %s396, 4 [#allocation3]
        %v458 = vld [vmem:[%s457] sm:$0xf]
        %s459 = scalar_lea.vmem [#allocation6], 16
        %v460 = vld [vmem:[%s459] sm:$0xf]
        %v461 = vld [vmem:[%s459 + $0x4] sm:$0xf]
        %v462 = vld [vmem:[%s459 + $0x8] sm:$0xf]
        %v463 = vld [vmem:[%s459 + $0xc] sm:$0xf]
        %v468 = vunpack.c.l.b16 %v460
        %v469 = vunpack.c.l.b16 %v461
        %v470 = vunpack.c.l.b16 %v462
        %v471 = vunpack.c.l.b16 %v463
        %v472 = vpack.c.b16 %v469, %v468
        %v473 = vpack.c.b16 %v471, %v470
        %vm476 = vcmask 261120
        %v478 = vsel %vm476, %v458, 0
        %480 = vmatprep.subr.bf16.mxu0 0
        %481 = vmatpush1.bf16.msra.mxu0 %v472
        %482 = vmatprep.subr.bf16.mxu0 0
        %483 = vmatpush1.bf16.msra.mxu0 %v473
        %484 = vmatprep.subr.bf16.mxu0 0
        %485 = vmatpush1.bf16.msra.mxu0 0
        %486 = vmatprep.subr.bf16.mxu0 0
        %487 = vmatpush1.bf16.msra.mxu0 0
        %488 = vmatprep.subr.bf16.mxu0 0
        %489 = vmatpush1.bf16.msra.mxu0 0
        %490 = vmatprep.subr.bf16.mxu0 0
        %491 = vmatpush1.bf16.msra.mxu0 0
        %492 = vmatprep.subr.bf16.mxu0 0
        %493 = vmatpush1.bf16.msra.mxu0 0
        %494 = vmatprep.subr.bf16.mxu0 0
        %495 = vmatpush1.bf16.msra.mxu0 0
        %496 = vmatprep.subr.bf16.mxu0 0
        %497 = vmatpush1.bf16.msra.mxu0 0
        %498 = vmatprep.subr.bf16.mxu0 0
        %499 = vmatpush1.bf16.msra.mxu0 0
        %500 = vmatprep.subr.bf16.mxu0 0
        %501 = vmatpush1.bf16.msra.mxu0 0
        %502 = vmatprep.subr.bf16.mxu0 0
        %503 = vmatpush1.bf16.msra.mxu0 0
        %504 = vmatprep.subr.bf16.mxu0 0
        %505 = vmatpush1.bf16.msra.mxu0 0
        %506 = vmatprep.subr.bf16.mxu0 0
        %507 = vmatpush1.bf16.msra.mxu0 0
        %508 = vmatprep.subr.bf16.mxu0 0
        %509 = vmatpush1.bf16.msra.mxu0 0
        %510 = vmatprep.subr.bf16.mxu0 0
        %511 = vmatpush1.bf16.msra.mxu0 0
        %512 = vmatprep.mubr.bf16.mxu0 0
        %513 = vmatmul.mubr.bf16.gmra.mrb[0].mxu0 %v478
        %v514 = vpop.f32.mrb[0].mxu0
        %v515 = vadd.f32 0.0, %v514
        %v516 = vpop.f32.mrb[0].mxu0
        %v517 = vpop.f32.mrb[0].mxu0
        %v518 = vpop.f32.mrb[0].mxu0
        %519 = vdwg.mxu0
        %v524 = vunpack.c.l.b16 %v453
        %v525 = vunpack.c.l.b16 %v454
        %v526 = vunpack.c.l.b16 %v455
        %v527 = vunpack.c.l.b16 %v456
        %v528 = vpack.c.b16 %v525, %v524
        %v529 = vpack.c.b16 %v527, %v526
        %v533 = vsel %vm476, %v452, 0
        %535 = vmatprep.subr.bf16.mxu0 0
        %536 = vmatpush1.bf16.msra.mxu0 %v528
        %537 = vmatprep.subr.bf16.mxu0 0
        %538 = vmatpush1.bf16.msra.mxu0 %v529
        %539 = vmatprep.subr.bf16.mxu0 0
        %540 = vmatpush1.bf16.msra.mxu0 0
        %541 = vmatprep.subr.bf16.mxu0 0
        %542 = vmatpush1.bf16.msra.mxu0 0
        %543 = vmatprep.subr.bf16.mxu0 0
        %544 = vmatpush1.bf16.msra.mxu0 0
        %545 = vmatprep.subr.bf16.mxu0 0
        %546 = vmatpush1.bf16.msra.mxu0 0
        %547 = vmatprep.subr.bf16.mxu0 0
        %548 = vmatpush1.bf16.msra.mxu0 0
        %549 = vmatprep.subr.bf16.mxu0 0
        %550 = vmatpush1.bf16.msra.mxu0 0
        %551 = vmatprep.subr.bf16.mxu0 0
        %552 = vmatpush1.bf16.msra.mxu0 0
        %553 = vmatprep.subr.bf16.mxu0 0
        %554 = vmatpush1.bf16.msra.mxu0 0
        %555 = vmatprep.subr.bf16.mxu0 0
        %556 = vmatpush1.bf16.msra.mxu0 0
        %557 = vmatprep.subr.bf16.mxu0 0
        %558 = vmatpush1.bf16.msra.mxu0 0
        %559 = vmatprep.subr.bf16.mxu0 0
        %560 = vmatpush1.bf16.msra.mxu0 0
        %561 = vmatprep.subr.bf16.mxu0 0
        %562 = vmatpush1.bf16.msra.mxu0 0
        %563 = vmatprep.subr.bf16.mxu0 0
        %564 = vmatpush1.bf16.msra.mxu0 0
        %565 = vmatprep.subr.bf16.mxu0 0
        %566 = vmatpush1.bf16.msra.mxu0 0
        %567 = vmatprep.mubr.bf16.mxu0 0
        %568 = vmatmul.mubr.bf16.gmra.mrb[0].mxu0 %v533
        %v569 = vpop.f32.mrb[0].mxu0
        %v570 = vadd.f32 %v515, %v569
        %v571 = vpop.f32.mrb[0].mxu0
        %v572 = vpop.f32.mrb[0].mxu0
        %v573 = vpop.f32.mrb[0].mxu0
        %574 = vdwg.mxu0
        %s575 = scalar_lea.vmem %s396, 8 [#allocation3]
        %v576 = vld [vmem:[%s575] sm:$0xf]
        %s577 = scalar_lea.vmem [#allocation6], 32
        %v578 = vld [vmem:[%s577] sm:$0xf]
        %v579 = vld [vmem:[%s577 + $0x4] sm:$0xf]
        %v580 = vld [vmem:[%s577 + $0x8] sm:$0xf]
        %v581 = vld [vmem:[%s577 + $0xc] sm:$0xf]
        %v586 = vunpack.c.l.b16 %v578
        %v587 = vunpack.c.l.b16 %v579
        %v588 = vunpack.c.l.b16 %v580
        %v589 = vunpack.c.l.b16 %v581
        %v590 = vpack.c.b16 %v587, %v586
        %v591 = vpack.c.b16 %v589, %v588
        %v595 = vsel %vm476, %v576, 0
        %597 = vmatprep.subr.bf16.mxu0 0
        %598 = vmatpush1.bf16.msra.mxu0 %v590
        %599 = vmatprep.subr.bf16.mxu0 0
        %600 = vmatpush1.bf16.msra.mxu0 %v591
        %601 = vmatprep.subr.bf16.mxu0 0
        %602 = vmatpush1.bf16.msra.mxu0 0
        %603 = vmatprep.subr.bf16.mxu0 0
        %604 = vmatpush1.bf16.msra.mxu0 0
        %605 = vmatprep.subr.bf16.mxu0 0
        %606 = vmatpush1.bf16.msra.mxu0 0
        %607 = vmatprep.subr.bf16.mxu0 0
        %608 = vmatpush1.bf16.msra.mxu0 0
        %609 = vmatprep.subr.bf16.mxu0 0
        %610 = vmatpush1.bf16.msra.mxu0 0
        %611 = vmatprep.subr.bf16.mxu0 0
        %612 = vmatpush1.bf16.msra.mxu0 0
        %613 = vmatprep.subr.bf16.mxu0 0
        %614 = vmatpush1.bf16.msra.mxu0 0
        %615 = vmatprep.subr.bf16.mxu0 0
        %616 = vmatpush1.bf16.msra.mxu0 0
        %617 = vmatprep.subr.bf16.mxu0 0
        %618 = vmatpush1.bf16.msra.mxu0 0
        %619 = vmatprep.subr.bf16.mxu0 0
        %620 = vmatpush1.bf16.msra.mxu0 0
        %621 = vmatprep.subr.bf16.mxu0 0
        %622 = vmatpush1.bf16.msra.mxu0 0
        %623 = vmatprep.subr.bf16.mxu0 0
        %624 = vmatpush1.bf16.msra.mxu0 0
        %625 = vmatprep.subr.bf16.mxu0 0
        %626 = vmatpush1.bf16.msra.mxu0 0
        %627 = vmatprep.subr.bf16.mxu0 0
        %628 = vmatpush1.bf16.msra.mxu0 0
        %629 = vmatprep.mubr.bf16.mxu0 0
        %630 = vmatmul.mubr.bf16.gmra.mrb[0].mxu0 %v595
        %v631 = vpop.f32.mrb[0].mxu0
        %v632 = vadd.f32 0.0, %v631
        %v633 = vpop.f32.mrb[0].mxu0
        %v634 = vpop.f32.mrb[0].mxu0
        %v635 = vpop.f32.mrb[0].mxu0
        %636 = vdwg.mxu0
        %v637 = vadd.f32 %v570, %v632
        %s638 = scalar_lea.vmem %s396, 12 [#allocation3]
        %v639 = vld [vmem:[%s638] sm:$0xf]
        %s640 = scalar_lea.vmem [#allocation6], 48
        %v641 = vld [vmem:[%s640] sm:$0xf]
        %v642 = vld [vmem:[%s640 + $0x4] sm:$0xf]
        %v643 = vld [vmem:[%s640 + $0x8] sm:$0xf]
        %v644 = vld [vmem:[%s640 + $0xc] sm:$0xf]
        %v649 = vunpack.c.l.b16 %v641
        %v650 = vunpack.c.l.b16 %v642
        %v651 = vunpack.c.l.b16 %v643
        %v652 = vunpack.c.l.b16 %v644
        %v653 = vpack.c.b16 %v650, %v649
        %v654 = vpack.c.b16 %v652, %v651
        %v658 = vsel %vm476, %v639, 0
        %660 = vmatprep.subr.bf16.mxu0 0
        %661 = vmatpush1.bf16.msra.mxu0 %v653
        %662 = vmatprep.subr.bf16.mxu0 0
        %663 = vmatpush1.bf16.msra.mxu0 %v654
        %664 = vmatprep.subr.bf16.mxu0 0
        %665 = vmatpush1.bf16.msra.mxu0 0
        %666 = vmatprep.subr.bf16.mxu0 0
        %667 = vmatpush1.bf16.msra.mxu0 0
        %668 = vmatprep.subr.bf16.mxu0 0
        %669 = vmatpush1.bf16.msra.mxu0 0
        %670 = vmatprep.subr.bf16.mxu0 0
        %671 = vmatpush1.bf16.msra.mxu0 0
        %672 = vmatprep.subr.bf16.mxu0 0
        %673 = vmatpush1.bf16.msra.mxu0 0
        %674 = vmatprep.subr.bf16.mxu0 0
        %675 = vmatpush1.bf16.msra.mxu0 0
        %676 = vmatprep.subr.bf16.mxu0 0
        %677 = vmatpush1.bf16.msra.mxu0 0
        %678 = vmatprep.subr.bf16.mxu0 0
        %679 = vmatpush1.bf16.msra.mxu0 0
        %680 = vmatprep.subr.bf16.mxu0 0
        %681 = vmatpush1.bf16.msra.mxu0 0
        %682 = vmatprep.subr.bf16.mxu0 0
        %683 = vmatpush1.bf16.msra.mxu0 0
        %684 = vmatprep.subr.bf16.mxu0 0
        %685 = vmatpush1.bf16.msra.mxu0 0
        %686 = vmatprep.subr.bf16.mxu0 0
        %687 = vmatpush1.bf16.msra.mxu0 0
        %688 = vmatprep.subr.bf16.mxu0 0
        %689 = vmatpush1.bf16.msra.mxu0 0
        %690 = vmatprep.subr.bf16.mxu0 0
        %691 = vmatpush1.bf16.msra.mxu0 0
        %692 = vmatprep.mubr.bf16.mxu0 0
        %693 = vmatmul.mubr.bf16.gmra.mrb[0].mxu0 %v658
        %v694 = vpop.f32.mrb[0].mxu0
        %v695 = vadd.f32 0.0, %v694
        %v696 = vpop.f32.mrb[0].mxu0
        %v697 = vpop.f32.mrb[0].mxu0
        %v698 = vpop.f32.mrb[0].mxu0
        %699 = vdwg.mxu0
        %v700 = vadd.f32 %v637, %v695
        %s701 = scalar_lea.vmem %s396, 16 [#allocation3]
        %v702 = vld [vmem:[%s701] sm:$0xf]
        %s703 = scalar_lea.vmem [#allocation6], 64
        %v704 = vld [vmem:[%s703] sm:$0xf]
        %v705 = vld [vmem:[%s703 + $0x4] sm:$0xf]
        %v706 = vld [vmem:[%s703 + $0x8] sm:$0xf]
        %v707 = vld [vmem:[%s703 + $0xc] sm:$0xf]
        %v712 = vunpack.c.l.b16 %v704
        %v713 = vunpack.c.l.b16 %v705
        %v714 = vunpack.c.l.b16 %v706
        %v715 = vunpack.c.l.b16 %v707
        %v716 = vpack.c.b16 %v713, %v712
        %v717 = vpack.c.b16 %v715, %v714
        %v721 = vsel %vm476, %v702, 0
        %723 = vmatprep.subr.bf16.mxu0 0
        %724 = vmatpush1.bf16.msra.mxu0 %v716
        %725 = vmatprep.subr.bf16.mxu0 0
        %726 = vmatpush1.bf16.msra.mxu0 %v717
        %727 = vmatprep.subr.bf16.mxu0 0
        %728 = vmatpush1.bf16.msra.mxu0 0
        %729 = vmatprep.subr.bf16.mxu0 0
        %730 = vmatpush1.bf16.msra.mxu0 0
        %731 = vmatprep.subr.bf16.mxu0 0
        %732 = vmatpush1.bf16.msra.mxu0 0
        %733 = vmatprep.subr.bf16.mxu0 0
        %734 = vmatpush1.bf16.msra.mxu0 0
        %735 = vmatprep.subr.bf16.mxu0 0
        %736 = vmatpush1.bf16.msra.mxu0 0
        %737 = vmatprep.subr.bf16.mxu0 0
        %738 = vmatpush1.bf16.msra.mxu0 0
        %739 = vmatprep.subr.bf16.mxu0 0
        %740 = vmatpush1.bf16.msra.mxu0 0
        %741 = vmatprep.subr.bf16.mxu0 0
        %742 = vmatpush1.bf16.msra.mxu0 0
        %743 = vmatprep.subr.bf16.mxu0 0
        %744 = vmatpush1.bf16.msra.mxu0 0
        %745 = vmatprep.subr.bf16.mxu0 0
        %746 = vmatpush1.bf16.msra.mxu0 0
        %747 = vmatprep.subr.bf16.mxu0 0
        %748 = vmatpush1.bf16.msra.mxu0 0
        %749 = vmatprep.subr.bf16.mxu0 0
        %750 = vmatpush1.bf16.msra.mxu0 0
        %751 = vmatprep.subr.bf16.mxu0 0
        %752 = vmatpush1.bf16.msra.mxu0 0
        %753 = vmatprep.subr.bf16.mxu0 0
        %754 = vmatpush1.bf16.msra.mxu0 0
        %755 = vmatprep.mubr.bf16.mxu0 0
        %756 = vmatmul.mubr.bf16.gmra.mrb[0].mxu0 %v721
        %v757 = vpop.f32.mrb[0].mxu0
        %v758 = vadd.f32 0.0, %v757
        %v759 = vpop.f32.mrb[0].mxu0
        %v760 = vpop.f32.mrb[0].mxu0
        %v761 = vpop.f32.mrb[0].mxu0
        %762 = vdwg.mxu0
        %v763 = vadd.f32 %v700, %v758
        %s764 = scalar_lea.vmem %s396, 20 [#allocation3]
        %v765 = vld [vmem:[%s764] sm:$0xf]
        %s766 = scalar_lea.vmem [#allocation6], 80
        %v767 = vld [vmem:[%s766] sm:$0xf]
        %v768 = vld [vmem:[%s766 + $0x4] sm:$0xf]
        %v769 = vld [vmem:[%s766 + $0x8] sm:$0xf]
        %v770 = vld [vmem:[%s766 + $0xc] sm:$0xf]
        %v775 = vunpack.c.l.b16 %v767
        %v776 = vunpack.c.l.b16 %v768
        %v777 = vunpack.c.l.b16 %v769
        %v778 = vunpack.c.l.b16 %v770
        %v779 = vpack.c.b16 %v776, %v775
        %v780 = vpack.c.b16 %v778, %v777
        %v784 = vsel %vm476, %v765, 0
        %786 = vmatprep.subr.bf16.mxu0 0
        %787 = vmatpush1.bf16.msra.mxu0 %v779
        %788 = vmatprep.subr.bf16.mxu0 0
        %789 = vmatpush1.bf16.msra.mxu0 %v780
        %790 = vmatprep.subr.bf16.mxu0 0
        %791 = vmatpush1.bf16.msra.mxu0 0
        %792 = vmatprep.subr.bf16.mxu0 0
        %793 = vmatpush1.bf16.msra.mxu0 0
        %794 = vmatprep.subr.bf16.mxu0 0
        %795 = vmatpush1.bf16.msra.mxu0 0
        %796 = vmatprep.subr.bf16.mxu0 0
        %797 = vmatpush1.bf16.msra.mxu0 0
        %798 = vmatprep.subr.bf16.mxu0 0
        %799 = vmatpush1.bf16.msra.mxu0 0
        %800 = vmatprep.subr.bf16.mxu0 0
        %801 = vmatpush1.bf16.msra.mxu0 0
        %802 = vmatprep.subr.bf16.mxu0 0
        %803 = vmatpush1.bf16.msra.mxu0 0
        %804 = vmatprep.subr.bf16.mxu0 0
        %805 = vmatpush1.bf16.msra.mxu0 0
        %806 = vmatprep.subr.bf16.mxu0 0
        %807 = vmatpush1.bf16.msra.mxu0 0
        %808 = vmatprep.subr.bf16.mxu0 0
        %809 = vmatpush1.bf16.msra.mxu0 0
        %810 = vmatprep.subr.bf16.mxu0 0
        %811 = vmatpush1.bf16.msra.mxu0 0
        %812 = vmatprep.subr.bf16.mxu0 0
        %813 = vmatpush1.bf16.msra.mxu0 0
        %814 = vmatprep.subr.bf16.mxu0 0
        %815 = vmatpush1.bf16.msra.mxu0 0
        %816 = vmatprep.subr.bf16.mxu0 0
        %817 = vmatpush1.bf16.msra.mxu0 0
        %818 = vmatprep.mubr.bf16.mxu0 0
        %819 = vmatmul.mubr.bf16.gmra.mrb[0].mxu0 %v784
        %v820 = vpop.f32.mrb[0].mxu0
        %v821 = vadd.f32 0.0, %v820
        %v822 = vpop.f32.mrb[0].mxu0
        %v823 = vpop.f32.mrb[0].mxu0
        %v824 = vpop.f32.mrb[0].mxu0
        %825 = vdwg.mxu0
        %v826 = vadd.f32 %v763, %v821
        %s827 = scalar_lea.vmem %s396, 24 [#allocation3]
        %v828 = vld [vmem:[%s827] sm:$0xf]
        %s829 = scalar_lea.vmem [#allocation6], 96
        %v830 = vld [vmem:[%s829] sm:$0xf]
        %v831 = vld [vmem:[%s829 + $0x4] sm:$0xf]
        %v832 = vld [vmem:[%s829 + $0x8] sm:$0xf]
        %v833 = vld [vmem:[%s829 + $0xc] sm:$0xf]
        %v838 = vunpack.c.l.b16 %v830
        %v839 = vunpack.c.l.b16 %v831
        %v840 = vunpack.c.l.b16 %v832
        %v841 = vunpack.c.l.b16 %v833
        %v842 = vpack.c.b16 %v839, %v838
        %v843 = vpack.c.b16 %v841, %v840
        %v847 = vsel %vm476, %v828, 0
        %849 = vmatprep.subr.bf16.mxu0 0
        %850 = vmatpush1.bf16.msra.mxu0 %v842
        %851 = vmatprep.subr.bf16.mxu0 0
        %852 = vmatpush1.bf16.msra.mxu0 %v843
        %853 = vmatprep.subr.bf16.mxu0 0
        %854 = vmatpush1.bf16.msra.mxu0 0
        %855 = vmatprep.subr.bf16.mxu0 0
        %856 = vmatpush1.bf16.msra.mxu0 0
        %857 = vmatprep.subr.bf16.mxu0 0
        %858 = vmatpush1.bf16.msra.mxu0 0
        %859 = vmatprep.subr.bf16.mxu0 0
        %860 = vmatpush1.bf16.msra.mxu0 0
        %861 = vmatprep.subr.bf16.mxu0 0
        %862 = vmatpush1.bf16.msra.mxu0 0
        %863 = vmatprep.subr.bf16.mxu0 0
        %864 = vmatpush1.bf16.msra.mxu0 0
        %865 = vmatprep.subr.bf16.mxu0 0
        %866 = vmatpush1.bf16.msra.mxu0 0
        %867 = vmatprep.subr.bf16.mxu0 0
        %868 = vmatpush1.bf16.msra.mxu0 0
        %869 = vmatprep.subr.bf16.mxu0 0
        %870 = vmatpush1.bf16.msra.mxu0 0
        %871 = vmatprep.subr.bf16.mxu0 0
        %872 = vmatpush1.bf16.msra.mxu0 0
        %873 = vmatprep.subr.bf16.mxu0 0
        %874 = vmatpush1.bf16.msra.mxu0 0
        %875 = vmatprep.subr.bf16.mxu0 0
        %876 = vmatpush1.bf16.msra.mxu0 0
        %877 = vmatprep.subr.bf16.mxu0 0
        %878 = vmatpush1.bf16.msra.mxu0 0
        %879 = vmatprep.subr.bf16.mxu0 0
        %880 = vmatpush1.bf16.msra.mxu0 0
        %881 = vmatprep.mubr.bf16.mxu0 0
        %882 = vmatmul.mubr.bf16.gmra.mrb[0].mxu0 %v847
        %v883 = vpop.f32.mrb[0].mxu0
        %v884 = vadd.f32 0.0, %v883
        %v885 = vpop.f32.mrb[0].mxu0
        %v886 = vpop.f32.mrb[0].mxu0
        %v887 = vpop.f32.mrb[0].mxu0
        %888 = vdwg.mxu0
        %v889 = vadd.f32 %v826, %v884
        %s890 = scalar_lea.vmem %s396, 28 [#allocation3]
        %v891 = vld [vmem:[%s890] sm:$0xf]
        %s892 = scalar_lea.vmem [#allocation6], 112
        %v893 = vld [vmem:[%s892] sm:$0xf]
        %v894 = vld [vmem:[%s892 + $0x4] sm:$0xf]
        %v895 = vld [vmem:[%s892 + $0x8] sm:$0xf]
        %v896 = vld [vmem:[%s892 + $0xc] sm:$0xf]
        %v901 = vunpack.c.l.b16 %v893
        %v902 = vunpack.c.l.b16 %v894
        %v903 = vunpack.c.l.b16 %v895
        %v904 = vunpack.c.l.b16 %v896
        %v905 = vpack.c.b16 %v902, %v901
        %v906 = vpack.c.b16 %v904, %v903
        %v910 = vsel %vm476, %v891, 0
        %912 = vmatprep.subr.bf16.mxu0 0
        %913 = vmatpush1.bf16.msra.mxu0 %v905
        %914 = vmatprep.subr.bf16.mxu0 0
        %915 = vmatpush1.bf16.msra.mxu0 %v906
        %916 = vmatprep.subr.bf16.mxu0 0
        %917 = vmatpush1.bf16.msra.mxu0 0
        %918 = vmatprep.subr.bf16.mxu0 0
        %919 = vmatpush1.bf16.msra.mxu0 0
        %920 = vmatprep.subr.bf16.mxu0 0
        %921 = vmatpush1.bf16.msra.mxu0 0
        %922 = vmatprep.subr.bf16.mxu0 0
        %923 = vmatpush1.bf16.msra.mxu0 0
        %924 = vmatprep.subr.bf16.mxu0 0
        %925 = vmatpush1.bf16.msra.mxu0 0
        %926 = vmatprep.subr.bf16.mxu0 0
        %927 = vmatpush1.bf16.msra.mxu0 0
        %928 = vmatprep.subr.bf16.mxu0 0
        %929 = vmatpush1.bf16.msra.mxu0 0
        %930 = vmatprep.subr.bf16.mxu0 0
        %931 = vmatpush1.bf16.msra.mxu0 0
        %932 = vmatprep.subr.bf16.mxu0 0
        %933 = vmatpush1.bf16.msra.mxu0 0
        %934 = vmatprep.subr.bf16.mxu0 0
        %935 = vmatpush1.bf16.msra.mxu0 0
        %936 = vmatprep.subr.bf16.mxu0 0
        %937 = vmatpush1.bf16.msra.mxu0 0
        %938 = vmatprep.subr.bf16.mxu0 0
        %939 = vmatpush1.bf16.msra.mxu0 0
        %940 = vmatprep.subr.bf16.mxu0 0
        %941 = vmatpush1.bf16.msra.mxu0 0
        %942 = vmatprep.subr.bf16.mxu0 0
        %943 = vmatpush1.bf16.msra.mxu0 0
        %944 = vmatprep.mubr.bf16.mxu0 0
        %945 = vmatmul.mubr.bf16.gmra.mrb[0].mxu0 %v910
        %v946 = vpop.f32.mrb[0].mxu0
        %v947 = vadd.f32 0.0, %v946
        %v948 = vpop.f32.mrb[0].mxu0
        %v949 = vpop.f32.mrb[0].mxu0
        %v950 = vpop.f32.mrb[0].mxu0
        %951 = vdwg.mxu0
        %v952 = vadd.f32 %v889, %v947
        %s953 = scalar_lea.vmem %s396, 32 [#allocation3]
        %v954 = vld [vmem:[%s953] sm:$0xf]
        %s955 = scalar_lea.vmem [#allocation6], 128
        %v956 = vld [vmem:[%s955] sm:$0xf]
        %v957 = vld [vmem:[%s955 + $0x4] sm:$0xf]
        %v958 = vld [vmem:[%s955 + $0x8] sm:$0xf]
        %v959 = vld [vmem:[%s955 + $0xc] sm:$0xf]
        %v964 = vunpack.c.l.b16 %v956
        %v965 = vunpack.c.l.b16 %v957
        %v966 = vunpack.c.l.b16 %v958
        %v967 = vunpack.c.l.b16 %v959
        %v968 = vpack.c.b16 %v965, %v964
        %v969 = vpack.c.b16 %v967, %v966
        %v973 = vsel %vm476, %v954, 0
        %975 = vmatprep.subr.bf16.mxu0 0
        %976 = vmatpush1.bf16.msra.mxu0 %v968
        %977 = vmatprep.subr.bf16.mxu0 0
        %978 = vmatpush1.bf16.msra.mxu0 %v969
        %979 = vmatprep.subr.bf16.mxu0 0
        %980 = vmatpush1.bf16.msra.mxu0 0
        %981 = vmatprep.subr.bf16.mxu0 0
        %982 = vmatpush1.bf16.msra.mxu0 0
        %983 = vmatprep.subr.bf16.mxu0 0
        %984 = vmatpush1.bf16.msra.mxu0 0
        %985 = vmatprep.subr.bf16.mxu0 0
        %986 = vmatpush1.bf16.msra.mxu0 0
        %987 = vmatprep.subr.bf16.mxu0 0
        %988 = vmatpush1.bf16.msra.mxu0 0
        %989 = vmatprep.subr.bf16.mxu0 0
        %990 = vmatpush1.bf16.msra.mxu0 0
        %991 = vmatprep.subr.bf16.mxu0 0
        %992 = vmatpush1.bf16.msra.mxu0 0
        %993 = vmatprep.subr.bf16.mxu0 0
        %994 = vmatpush1.bf16.msra.mxu0 0
        %995 = vmatprep.subr.bf16.mxu0 0
        %996 = vmatpush1.bf16.msra.mxu0 0
        %997 = vmatprep.subr.bf16.mxu0 0
        %998 = vmatpush1.bf16.msra.mxu0 0
        %999 = vmatprep.subr.bf16.mxu0 0
        %1000 = vmatpush1.bf16.msra.mxu0 0
        %1001 = vmatprep.subr.bf16.mxu0 0
        %1002 = vmatpush1.bf16.msra.mxu0 0
        %1003 = vmatprep.subr.bf16.mxu0 0
        %1004 = vmatpush1.bf16.msra.mxu0 0
        %1005 = vmatprep.subr.bf16.mxu0 0
        %1006 = vmatpush1.bf16.msra.mxu0 0
        %1007 = vmatprep.mubr.bf16.mxu0 0
        %1008 = vmatmul.mubr.bf16.gmra.mrb[0].mxu0 %v973
        %v1009 = vpop.f32.mrb[0].mxu0
        %v1010 = vadd.f32 0.0, %v1009
        %v1011 = vpop.f32.mrb[0].mxu0
        %v1012 = vpop.f32.mrb[0].mxu0
        %v1013 = vpop.f32.mrb[0].mxu0
        %1014 = vdwg.mxu0
        %v1015 = vadd.f32 %v952, %v1010
        %vm1016 = vcmask 523264
        %v1017 = vsel %vm1016, %v1015, 0.0
        %1018 = vadd.xlane.f32.xlu0 %v1017
        %v1019 = vpop.xlane.xlu0 %1018
        %v1020 = vrot.slane %v1019, 4
        %v1021 = vadd.f32 %v1019, %v1020
        %v1022 = vrot.slane %v1021, 2
        %v1023 = vadd.f32 %v1021, %v1022
        %v1024 = vrot.slane %v1023, 1
        %v1025 = vadd.f32 %v1023, %v1024
        %s1026 = vtos %v1025
        %v1027 = vmul.f32 %v1015, %v1015
        %v1028 = vsel %vm1016, %v1027, 0.0
        %1029 = vadd.xlane.f32.xlu0 %v1028
        %v1030 = vpop.xlane.xlu0 %1029
        %v1031 = vrot.slane %v1030, 4
        %v1032 = vadd.f32 %v1030, %v1031
        %v1033 = vrot.slane %v1032, 2
        %v1034 = vadd.f32 %v1032, %v1033
        %v1035 = vrot.slane %v1034, 1
        %v1036 = vadd.f32 %v1034, %v1035
        %s1037 = vtos %v1036
        %v1038 = vrcp.pop 512.0
        %s1039 = vtos %v1038
        %s1040 = smul.f32 %s1026, %s1039
        %v1041 = vrcp.pop 512.0
        %s1042 = vtos %v1041
        %s1043 = smul.f32 %s1037, %s1042
        %s1044 = smul.f32 %s1040, %s1040
        %s1045 = ssub.f32 %s1043, %s1044
        %s1046 = smax.f32 %s1045, 0.0
        %v1047 = vstv %s1040
        %v1048 = vsub.f32 %v1015, %v1047
        %s1049 = sadd.f32 %s1046, 1e-05
        %v1050 = vstv %s1049
        %v1051 = vrsqrt.pop %v1050
        %s1052 = vtos %v1051
        %v1053 = vstv %s1052
        %v1054 = vmul.f32 %v1048, %v1053
        %v1055 = vld [vmem:[%s2] sm:$0x1]
        %v1057 = vlaneseq
        %v1058 = vshrl.u32 %v1057, 7
        %v1059 = vsub.s32 0, %v1058
        %v1060 = vrot.slane %v1055, %v1059
        %v1062 = vmul.f32 %v1054, %v1060
        %v1063 = vld [vmem:[%s3] sm:$0x1]
        %v1065 = vlaneseq
        %v1066 = vshrl.u32 %v1065, 7
        %v1067 = vsub.s32 0, %v1066
        %v1068 = vrot.slane %v1063, %v1067
        %v1070 = vadd.f32 %v1062, %v1068
        %v1071 = vmax.f32 %v1070, 0.0
        %vm1072 = vcmask 654336
        %1073 = vst.msk [vmem:[#allocation2] sm:$0xff] %vm1072, 0.0
        %vm1074 = vcmask 648192
        %1075 = vst.msk [vmem:[#allocation2 + $0x8] sm:$0x3] %vm1074, 0.0
        %1077 = vrot.lane.b32.xlu0 %v1071, 8
        %v1078 = vpop.permute.xlu0 %1077
        %vm1080 = vcmask 588864
        %1081 = vst.msk [vmem:[#allocation2 + $0x1] sm:$0xff] %vm1080, %v1078
        %v1082 = vld [vmem:[#allocation2] sm:$0xff]
        %v1083 = vpack.c.bf16 %v1082, %v1082
        %v1084 = vld [vmem:[#allocation8] sm:$0xf]
        %v1085 = vld [vmem:[#allocation8 + $0x4] sm:$0xf]
        %v1086 = vld [vmem:[#allocation8 + $0x8] sm:$0xf]
        %v1087 = vld [vmem:[#allocation8 + $0xc] sm:$0xf]
        %v1088 = vld [vmem:[#allocation8 + $0x10] sm:$0xf]
        %v1089 = vld [vmem:[#allocation8 + $0x14] sm:$0xf]
        %v1090 = vld [vmem:[#allocation8 + $0x18] sm:$0xf]
        %v1091 = vld [vmem:[#allocation8 + $0x1c] sm:$0xf]
        %s1092 = scalar_lea.vmem [#allocation8], 32
        %v1093 = vld [vmem:[%s1092] sm:$0xf]
        %v1094 = vld [vmem:[%s1092 + $0x4] sm:$0xf]
        %v1095 = vld [vmem:[%s1092 + $0x8] sm:$0xf]
        %v1096 = vld [vmem:[%s1092 + $0xc] sm:$0xf]
        %v1097 = vld [vmem:[%s1092 + $0x10] sm:$0xf]
        %v1098 = vld [vmem:[%s1092 + $0x14] sm:$0xf]
        %v1099 = vld [vmem:[%s1092 + $0x18] sm:$0xf]
        %v1100 = vld [vmem:[%s1092 + $0x1c] sm:$0xf]
        %1102 = vrot.lane.b32.xlu0 %v1083, 120
        %v1103 = vpop.permute.xlu0 %1102
        %v1112 = vunpack.c.l.b16 %v1093
        %v1113 = vunpack.c.l.b16 %v1094
        %v1114 = vunpack.c.l.b16 %v1095
        %v1115 = vunpack.c.l.b16 %v1096
        %v1116 = vunpack.c.l.b16 %v1097
        %v1117 = vunpack.c.l.b16 %v1098
        %v1118 = vunpack.c.l.b16 %v1099
        %v1119 = vunpack.c.l.b16 %v1100
        %v1120 = vpack.c.b16 %v1113, %v1112
        %v1121 = vpack.c.b16 %v1115, %v1114
        %v1122 = vpack.c.b16 %v1117, %v1116
        %v1123 = vpack.c.b16 %v1119, %v1118
        %v1129 = vsel %vm1016, %v1103, 0
        %1131 = vmatprep.subr.bf16.mxu0 0
        %1132 = vmatpush1.bf16.msra.mxu0 %v1120
        %1133 = vmatprep.subr.bf16.mxu0 0
        %1134 = vmatpush1.bf16.msra.mxu0 %v1121
        %1135 = vmatprep.subr.bf16.mxu0 0
        %1136 = vmatpush1.bf16.msra.mxu0 %v1122
        %1137 = vmatprep.subr.bf16.mxu0 0
        %1138 = vmatpush1.bf16.msra.mxu0 %v1123
        %1139 = vmatprep.subr.bf16.mxu0 0
        %1140 = vmatpush1.bf16.msra.mxu0 0
        %1141 = vmatprep.subr.bf16.mxu0 0
        %1142 = vmatpush1.bf16.msra.mxu0 0
        %1143 = vmatprep.subr.bf16.mxu0 0
        %1144 = vmatpush1.bf16.msra.mxu0 0
        %1145 = vmatprep.subr.bf16.mxu0 0
        %1146 = vmatpush1.bf16.msra.mxu0 0
        %1147 = vmatprep.subr.bf16.mxu0 0
        %1148 = vmatpush1.bf16.msra.mxu0 0
        %1149 = vmatprep.subr.bf16.mxu0 0
        %1150 = vmatpush1.bf16.msra.mxu0 0
        %1151 = vmatprep.subr.bf16.mxu0 0
        %1152 = vmatpush1.bf16.msra.mxu0 0
        %1153 = vmatprep.subr.bf16.mxu0 0
        %1154 = vmatpush1.bf16.msra.mxu0 0
        %1155 = vmatprep.subr.bf16.mxu0 0
        %1156 = vmatpush1.bf16.msra.mxu0 0
        %1157 = vmatprep.subr.bf16.mxu0 0
        %1158 = vmatpush1.bf16.msra.mxu0 0
        %1159 = vmatprep.subr.bf16.mxu0 0
        %1160 = vmatpush1.bf16.msra.mxu0 0
        %1161 = vmatprep.subr.bf16.mxu0 0
        %1162 = vmatpush1.bf16.msra.mxu0 0
        %1163 = vmatprep.mubr.bf16.mxu0 0
        %1164 = vmatmul.mubr.bf16.gmra.mrb[0].mxu0 %v1129
        %v1165 = vpop.f32.mrb[0].mxu0
        %v1166 = vadd.f32 0.0, %v1165
        %v1167 = vpop.f32.mrb[0].mxu0
        %v1168 = vpop.f32.mrb[0].mxu0
        %v1169 = vpop.f32.mrb[0].mxu0
        %1170 = vdwg.mxu0
        %v1179 = vunpack.c.l.b16 %v1084
        %v1180 = vunpack.c.l.b16 %v1085
        %v1181 = vunpack.c.l.b16 %v1086
        %v1182 = vunpack.c.l.b16 %v1087
        %v1183 = vunpack.c.l.b16 %v1088
        %v1184 = vunpack.c.l.b16 %v1089
        %v1185 = vunpack.c.l.b16 %v1090
        %v1186 = vunpack.c.l.b16 %v1091
        %v1187 = vpack.c.b16 %v1180, %v1179
        %v1188 = vpack.c.b16 %v1182, %v1181
        %v1189 = vpack.c.b16 %v1184, %v1183
        %v1190 = vpack.c.b16 %v1186, %v1185
        %v1196 = vsel %vm1016, %v1083, 0
        %1198 = vmatprep.subr.bf16.mxu0 0
        %1199 = vmatpush1.bf16.msra.mxu0 %v1187
        %1200 = vmatprep.subr.bf16.mxu0 0
        %1201 = vmatpush1.bf16.msra.mxu0 %v1188
        %1202 = vmatprep.subr.bf16.mxu0 0
        %1203 = vmatpush1.bf16.msra.mxu0 %v1189
        %1204 = vmatprep.subr.bf16.mxu0 0
        %1205 = vmatpush1.bf16.msra.mxu0 %v1190
        %1206 = vmatprep.subr.bf16.mxu0 0
        %1207 = vmatpush1.bf16.msra.mxu0 0
        %1208 = vmatprep.subr.bf16.mxu0 0
        %1209 = vmatpush1.bf16.msra.mxu0 0
        %1210 = vmatprep.subr.bf16.mxu0 0
        %1211 = vmatpush1.bf16.msra.mxu0 0
        %1212 = vmatprep.subr.bf16.mxu0 0
        %1213 = vmatpush1.bf16.msra.mxu0 0
        %1214 = vmatprep.subr.bf16.mxu0 0
        %1215 = vmatpush1.bf16.msra.mxu0 0
        %1216 = vmatprep.subr.bf16.mxu0 0
        %1217 = vmatpush1.bf16.msra.mxu0 0
        %1218 = vmatprep.subr.bf16.mxu0 0
        %1219 = vmatpush1.bf16.msra.mxu0 0
        %1220 = vmatprep.subr.bf16.mxu0 0
        %1221 = vmatpush1.bf16.msra.mxu0 0
        %1222 = vmatprep.subr.bf16.mxu0 0
        %1223 = vmatpush1.bf16.msra.mxu0 0
        %1224 = vmatprep.subr.bf16.mxu0 0
        %1225 = vmatpush1.bf16.msra.mxu0 0
        %1226 = vmatprep.subr.bf16.mxu0 0
        %1227 = vmatpush1.bf16.msra.mxu0 0
        %1228 = vmatprep.subr.bf16.mxu0 0
        %1229 = vmatpush1.bf16.msra.mxu0 0
        %1230 = vmatprep.mubr.bf16.mxu0 0
        %1231 = vmatmul.mubr.bf16.gmra.mrb[0].mxu0 %v1196
        %v1232 = vpop.f32.mrb[0].mxu0
        %v1233 = vadd.f32 %v1166, %v1232
        %v1234 = vpop.f32.mrb[0].mxu0
        %v1235 = vpop.f32.mrb[0].mxu0
        %v1236 = vpop.f32.mrb[0].mxu0
        %1237 = vdwg.mxu0
        %s1238 = scalar_lea.vmem [#allocation8], 64
        %v1239 = vld [vmem:[%s1238] sm:$0xf]
        %v1240 = vld [vmem:[%s1238 + $0x4] sm:$0xf]
        %v1241 = vld [vmem:[%s1238 + $0x8] sm:$0xf]
        %v1242 = vld [vmem:[%s1238 + $0xc] sm:$0xf]
        %v1243 = vld [vmem:[%s1238 + $0x10] sm:$0xf]
        %v1244 = vld [vmem:[%s1238 + $0x14] sm:$0xf]
        %v1245 = vld [vmem:[%s1238 + $0x18] sm:$0xf]
        %v1246 = vld [vmem:[%s1238 + $0x1c] sm:$0xf]
        %1247 = vrot.lane.b32.xlu0 %v1083, 112
        %v1248 = vpop.permute.xlu0 %1247
        %v1257 = vunpack.c.l.b16 %v1239
        %v1258 = vunpack.c.l.b16 %v1240
        %v1259 = vunpack.c.l.b16 %v1241
        %v1260 = vunpack.c.l.b16 %v1242
        %v1261 = vunpack.c.l.b16 %v1243
        %v1262 = vunpack.c.l.b16 %v1244
        %v1263 = vunpack.c.l.b16 %v1245
        %v1264 = vunpack.c.l.b16 %v1246
        %v1265 = vpack.c.b16 %v1258, %v1257
        %v1266 = vpack.c.b16 %v1260, %v1259
        %v1267 = vpack.c.b16 %v1262, %v1261
        %v1268 = vpack.c.b16 %v1264, %v1263
        %v1274 = vsel %vm1016, %v1248, 0
        %1276 = vmatprep.subr.bf16.mxu0 0
        %1277 = vmatpush1.bf16.msra.mxu0 %v1265
        %1278 = vmatprep.subr.bf16.mxu0 0
        %1279 = vmatpush1.bf16.msra.mxu0 %v1266
        %1280 = vmatprep.subr.bf16.mxu0 0
        %1281 = vmatpush1.bf16.msra.mxu0 %v1267
        %1282 = vmatprep.subr.bf16.mxu0 0
        %1283 = vmatpush1.bf16.msra.mxu0 %v1268
        %1284 = vmatprep.subr.bf16.mxu0 0
        %1285 = vmatpush1.bf16.msra.mxu0 0
        %1286 = vmatprep.subr.bf16.mxu0 0
        %1287 = vmatpush1.bf16.msra.mxu0 0
        %1288 = vmatprep.subr.bf16.mxu0 0
        %1289 = vmatpush1.bf16.msra.mxu0 0
        %1290 = vmatprep.subr.bf16.mxu0 0
        %1291 = vmatpush1.bf16.msra.mxu0 0
        %1292 = vmatprep.subr.bf16.mxu0 0
        %1293 = vmatpush1.bf16.msra.mxu0 0
        %1294 = vmatprep.subr.bf16.mxu0 0
        %1295 = vmatpush1.bf16.msra.mxu0 0
        %1296 = vmatprep.subr.bf16.mxu0 0
        %1297 = vmatpush1.bf16.msra.mxu0 0
        %1298 = vmatprep.subr.bf16.mxu0 0
        %1299 = vmatpush1.bf16.msra.mxu0 0
        %1300 = vmatprep.subr.bf16.mxu0 0
        %1301 = vmatpush1.bf16.msra.mxu0 0
        %1302 = vmatprep.subr.bf16.mxu0 0
        %1303 = vmatpush1.bf16.msra.mxu0 0
        %1304 = vmatprep.subr.bf16.mxu0 0
        %1305 = vmatpush1.bf16.msra.mxu0 0
        %1306 = vmatprep.subr.bf16.mxu0 0
        %1307 = vmatpush1.bf16.msra.mxu0 0
        %1308 = vmatprep.mubr.bf16.mxu0 0
        %1309 = vmatmul.mubr.bf16.gmra.mrb[0].mxu0 %v1274
        %v1310 = vpop.f32.mrb[0].mxu0
        %v1311 = vadd.f32 0.0, %v1310
        %v1312 = vpop.f32.mrb[0].mxu0
        %v1313 = vpop.f32.mrb[0].mxu0
        %v1314 = vpop.f32.mrb[0].mxu0
        %1315 = vdwg.mxu0
        %v1316 = vadd.f32 %v1233, %v1311
        %v1317 = vld [vmem:[#allocation2 + $0x1] sm:$0xff]
        %v1318 = vpack.c.bf16 %v1317, %v1317
        %s1319 = scalar_lea.vmem [#allocation8], 96
        %v1320 = vld [vmem:[%s1319] sm:$0xf]
        %v1321 = vld [vmem:[%s1319 + $0x4] sm:$0xf]
        %v1322 = vld [vmem:[%s1319 + $0x8] sm:$0xf]
        %v1323 = vld [vmem:[%s1319 + $0xc] sm:$0xf]
        %v1324 = vld [vmem:[%s1319 + $0x10] sm:$0xf]
        %v1325 = vld [vmem:[%s1319 + $0x14] sm:$0xf]
        %v1326 = vld [vmem:[%s1319 + $0x18] sm:$0xf]
        %v1327 = vld [vmem:[%s1319 + $0x1c] sm:$0xf]
        %v1336 = vunpack.c.l.b16 %v1320
        %v1337 = vunpack.c.l.b16 %v1321
        %v1338 = vunpack.c.l.b16 %v1322
        %v1339 = vunpack.c.l.b16 %v1323
        %v1340 = vunpack.c.l.b16 %v1324
        %v1341 = vunpack.c.l.b16 %v1325
        %v1342 = vunpack.c.l.b16 %v1326
        %v1343 = vunpack.c.l.b16 %v1327
        %v1344 = vpack.c.b16 %v1337, %v1336
        %v1345 = vpack.c.b16 %v1339, %v1338
        %v1346 = vpack.c.b16 %v1341, %v1340
        %v1347 = vpack.c.b16 %v1343, %v1342
        %v1353 = vsel %vm1016, %v1318, 0
        %1355 = vmatprep.subr.bf16.mxu0 0
        %1356 = vmatpush1.bf16.msra.mxu0 %v1344
        %1357 = vmatprep.subr.bf16.mxu0 0
        %1358 = vmatpush1.bf16.msra.mxu0 %v1345
        %1359 = vmatprep.subr.bf16.mxu0 0
        %1360 = vmatpush1.bf16.msra.mxu0 %v1346
        %1361 = vmatprep.subr.bf16.mxu0 0
        %1362 = vmatpush1.bf16.msra.mxu0 %v1347
        %1363 = vmatprep.subr.bf16.mxu0 0
        %1364 = vmatpush1.bf16.msra.mxu0 0
        %1365 = vmatprep.subr.bf16.mxu0 0
        %1366 = vmatpush1.bf16.msra.mxu0 0
        %1367 = vmatprep.subr.bf16.mxu0 0
        %1368 = vmatpush1.bf16.msra.mxu0 0
        %1369 = vmatprep.subr.bf16.mxu0 0
        %1370 = vmatpush1.bf16.msra.mxu0 0
        %1371 = vmatprep.subr.bf16.mxu0 0
        %1372 = vmatpush1.bf16.msra.mxu0 0
        %1373 = vmatprep.subr.bf16.mxu0 0
        %1374 = vmatpush1.bf16.msra.mxu0 0
        %1375 = vmatprep.subr.bf16.mxu0 0
        %1376 = vmatpush1.bf16.msra.mxu0 0
        %1377 = vmatprep.subr.bf16.mxu0 0
        %1378 = vmatpush1.bf16.msra.mxu0 0
        %1379 = vmatprep.subr.bf16.mxu0 0
        %1380 = vmatpush1.bf16.msra.mxu0 0
        %1381 = vmatprep.subr.bf16.mxu0 0
        %1382 = vmatpush1.bf16.msra.mxu0 0
        %1383 = vmatprep.subr.bf16.mxu0 0
        %1384 = vmatpush1.bf16.msra.mxu0 0
        %1385 = vmatprep.subr.bf16.mxu0 0
        %1386 = vmatpush1.bf16.msra.mxu0 0
        %1387 = vmatprep.mubr.bf16.mxu0 0
        %1388 = vmatmul.mubr.bf16.gmra.mrb[0].mxu0 %v1353
        %v1389 = vpop.f32.mrb[0].mxu0
        %v1390 = vadd.f32 0.0, %v1389
        %v1391 = vpop.f32.mrb[0].mxu0
        %v1392 = vpop.f32.mrb[0].mxu0
        %v1393 = vpop.f32.mrb[0].mxu0
        %1394 = vdwg.mxu0
        %v1395 = vadd.f32 %v1316, %v1390
        %s1396 = scalar_lea.vmem [#allocation8], 128
        %v1397 = vld [vmem:[%s1396] sm:$0xf]
        %v1398 = vld [vmem:[%s1396 + $0x4] sm:$0xf]
        %v1399 = vld [vmem:[%s1396 + $0x8] sm:$0xf]
        %v1400 = vld [vmem:[%s1396 + $0xc] sm:$0xf]
        %v1401 = vld [vmem:[%s1396 + $0x10] sm:$0xf]
        %v1402 = vld [vmem:[%s1396 + $0x14] sm:$0xf]
        %v1403 = vld [vmem:[%s1396 + $0x18] sm:$0xf]
        %v1404 = vld [vmem:[%s1396 + $0x1c] sm:$0xf]
        %1406 = vrot.lane.b32.xlu0 %v1318, 120
        %v1407 = vpop.permute.xlu0 %1406
        %v1416 = vunpack.c.l.b16 %v1397
        %v1417 = vunpack.c.l.b16 %v1398
        %v1418 = vunpack.c.l.b16 %v1399
        %v1419 = vunpack.c.l.b16 %v1400
        %v1420 = vunpack.c.l.b16 %v1401
        %v1421 = vunpack.c.l.b16 %v1402
        %v1422 = vunpack.c.l.b16 %v1403
        %v1423 = vunpack.c.l.b16 %v1404
        %v1424 = vpack.c.b16 %v1417, %v1416
        %v1425 = vpack.c.b16 %v1419, %v1418
        %v1426 = vpack.c.b16 %v1421, %v1420
        %v1427 = vpack.c.b16 %v1423, %v1422
        %v1433 = vsel %vm1016, %v1407, 0
        %1435 = vmatprep.subr.bf16.mxu0 0
        %1436 = vmatpush1.bf16.msra.mxu0 %v1424
        %1437 = vmatprep.subr.bf16.mxu0 0
        %1438 = vmatpush1.bf16.msra.mxu0 %v1425
        %1439 = vmatprep.subr.bf16.mxu0 0
        %1440 = vmatpush1.bf16.msra.mxu0 %v1426
        %1441 = vmatprep.subr.bf16.mxu0 0
        %1442 = vmatpush1.bf16.msra.mxu0 %v1427
        %1443 = vmatprep.subr.bf16.mxu0 0
        %1444 = vmatpush1.bf16.msra.mxu0 0
        %1445 = vmatprep.subr.bf16.mxu0 0
        %1446 = vmatpush1.bf16.msra.mxu0 0
        %1447 = vmatprep.subr.bf16.mxu0 0
        %1448 = vmatpush1.bf16.msra.mxu0 0
        %1449 = vmatprep.subr.bf16.mxu0 0
        %1450 = vmatpush1.bf16.msra.mxu0 0
        %1451 = vmatprep.subr.bf16.mxu0 0
        %1452 = vmatpush1.bf16.msra.mxu0 0
        %1453 = vmatprep.subr.bf16.mxu0 0
        %1454 = vmatpush1.bf16.msra.mxu0 0
        %1455 = vmatprep.subr.bf16.mxu0 0
        %1456 = vmatpush1.bf16.msra.mxu0 0
        %1457 = vmatprep.subr.bf16.mxu0 0
        %1458 = vmatpush1.bf16.msra.mxu0 0
        %1459 = vmatprep.subr.bf16.mxu0 0
        %1460 = vmatpush1.bf16.msra.mxu0 0
        %1461 = vmatprep.subr.bf16.mxu0 0
        %1462 = vmatpush1.bf16.msra.mxu0 0
        %1463 = vmatprep.subr.bf16.mxu0 0
        %1464 = vmatpush1.bf16.msra.mxu0 0
        %1465 = vmatprep.subr.bf16.mxu0 0
        %1466 = vmatpush1.bf16.msra.mxu0 0
        %1467 = vmatprep.mubr.bf16.mxu0 0
        %1468 = vmatmul.mubr.bf16.gmra.mrb[0].mxu0 %v1433
        %v1469 = vpop.f32.mrb[0].mxu0
        %v1470 = vadd.f32 0.0, %v1469
        %v1471 = vpop.f32.mrb[0].mxu0
        %v1472 = vpop.f32.mrb[0].mxu0
        %v1473 = vpop.f32.mrb[0].mxu0
        %1474 = vdwg.mxu0
        %v1475 = vadd.f32 %v1395, %v1470
        %s1476 = scalar_lea.vmem [#allocation8], 160
        %v1477 = vld [vmem:[%s1476] sm:$0xf]
        %v1478 = vld [vmem:[%s1476 + $0x4] sm:$0xf]
        %v1479 = vld [vmem:[%s1476 + $0x8] sm:$0xf]
        %v1480 = vld [vmem:[%s1476 + $0xc] sm:$0xf]
        %v1481 = vld [vmem:[%s1476 + $0x10] sm:$0xf]
        %v1482 = vld [vmem:[%s1476 + $0x14] sm:$0xf]
        %v1483 = vld [vmem:[%s1476 + $0x18] sm:$0xf]
        %v1484 = vld [vmem:[%s1476 + $0x1c] sm:$0xf]
        %1485 = vrot.lane.b32.xlu0 %v1318, 112
        %v1486 = vpop.permute.xlu0 %1485
        %v1495 = vunpack.c.l.b16 %v1477
        %v1496 = vunpack.c.l.b16 %v1478
        %v1497 = vunpack.c.l.b16 %v1479
        %v1498 = vunpack.c.l.b16 %v1480
        %v1499 = vunpack.c.l.b16 %v1481
        %v1500 = vunpack.c.l.b16 %v1482
        %v1501 = vunpack.c.l.b16 %v1483
        %v1502 = vunpack.c.l.b16 %v1484
        %v1503 = vpack.c.b16 %v1496, %v1495
        %v1504 = vpack.c.b16 %v1498, %v1497
        %v1505 = vpack.c.b16 %v1500, %v1499
        %v1506 = vpack.c.b16 %v1502, %v1501
        %v1512 = vsel %vm1016, %v1486, 0
        %1514 = vmatprep.subr.bf16.mxu0 0
        %1515 = vmatpush1.bf16.msra.mxu0 %v1503
        %1516 = vmatprep.subr.bf16.mxu0 0
        %1517 = vmatpush1.bf16.msra.mxu0 %v1504
        %1518 = vmatprep.subr.bf16.mxu0 0
        %1519 = vmatpush1.bf16.msra.mxu0 %v1505
        %1520 = vmatprep.subr.bf16.mxu0 0
        %1521 = vmatpush1.bf16.msra.mxu0 %v1506
        %1522 = vmatprep.subr.bf16.mxu0 0
        %1523 = vmatpush1.bf16.msra.mxu0 0
        %1524 = vmatprep.subr.bf16.mxu0 0
        %1525 = vmatpush1.bf16.msra.mxu0 0
        %1526 = vmatprep.subr.bf16.mxu0 0
        %1527 = vmatpush1.bf16.msra.mxu0 0
        %1528 = vmatprep.subr.bf16.mxu0 0
        %1529 = vmatpush1.bf16.msra.mxu0 0
        %1530 = vmatprep.subr.bf16.mxu0 0
        %1531 = vmatpush1.bf16.msra.mxu0 0
        %1532 = vmatprep.subr.bf16.mxu0 0
        %1533 = vmatpush1.bf16.msra.mxu0 0
        %1534 = vmatprep.subr.bf16.mxu0 0
        %1535 = vmatpush1.bf16.msra.mxu0 0
        %1536 = vmatprep.subr.bf16.mxu0 0
        %1537 = vmatpush1.bf16.msra.mxu0 0
        %1538 = vmatprep.subr.bf16.mxu0 0
        %1539 = vmatpush1.bf16.msra.mxu0 0
        %1540 = vmatprep.subr.bf16.mxu0 0
        %1541 = vmatpush1.bf16.msra.mxu0 0
        %1542 = vmatprep.subr.bf16.mxu0 0
        %1543 = vmatpush1.bf16.msra.mxu0 0
        %1544 = vmatprep.subr.bf16.mxu0 0
        %1545 = vmatpush1.bf16.msra.mxu0 0
        %1546 = vmatprep.mubr.bf16.mxu0 0
        %1547 = vmatmul.mubr.bf16.gmra.mrb[0].mxu0 %v1512
        %v1548 = vpop.f32.mrb[0].mxu0
        %v1549 = vadd.f32 0.0, %v1548
        %v1550 = vpop.f32.mrb[0].mxu0
        %v1551 = vpop.f32.mrb[0].mxu0
        %v1552 = vpop.f32.mrb[0].mxu0
        %1553 = vdwg.mxu0
        %v1554 = vadd.f32 %v1475, %v1549
        %v1555 = vld [vmem:[#allocation2 + $0x2] sm:$0xff]
        %v1556 = vpack.c.bf16 %v1555, %v1555
        %s1557 = scalar_lea.vmem [#allocation8], 192
        %v1558 = vld [vmem:[%s1557] sm:$0xf]
        %v1559 = vld [vmem:[%s1557 + $0x4] sm:$0xf]
        %v1560 = vld [vmem:[%s1557 + $0x8] sm:$0xf]
        %v1561 = vld [vmem:[%s1557 + $0xc] sm:$0xf]
        %v1562 = vld [vmem:[%s1557 + $0x10] sm:$0xf]
        %v1563 = vld [vmem:[%s1557 + $0x14] sm:$0xf]
        %v1564 = vld [vmem:[%s1557 + $0x18] sm:$0xf]
        %v1565 = vld [vmem:[%s1557 + $0x1c] sm:$0xf]
        %v1574 = vunpack.c.l.b16 %v1558
        %v1575 = vunpack.c.l.b16 %v1559
        %v1576 = vunpack.c.l.b16 %v1560
        %v1577 = vunpack.c.l.b16 %v1561
        %v1578 = vunpack.c.l.b16 %v1562
        %v1579 = vunpack.c.l.b16 %v1563
        %v1580 = vunpack.c.l.b16 %v1564
        %v1581 = vunpack.c.l.b16 %v1565
        %v1582 = vpack.c.b16 %v1575, %v1574
        %v1583 = vpack.c.b16 %v1577, %v1576
        %v1584 = vpack.c.b16 %v1579, %v1578
        %v1585 = vpack.c.b16 %v1581, %v1580
        %v1591 = vsel %vm1016, %v1556, 0
        %1593 = vmatprep.subr.bf16.mxu0 0
        %1594 = vmatpush1.bf16.msra.mxu0 %v1582
        %1595 = vmatprep.subr.bf16.mxu0 0
        %1596 = vmatpush1.bf16.msra.mxu0 %v1583
        %1597 = vmatprep.subr.bf16.mxu0 0
        %1598 = vmatpush1.bf16.msra.mxu0 %v1584
        %1599 = vmatprep.subr.bf16.mxu0 0
        %1600 = vmatpush1.bf16.msra.mxu0 %v1585
        %1601 = vmatprep.subr.bf16.mxu0 0
        %1602 = vmatpush1.bf16.msra.mxu0 0
        %1603 = vmatprep.subr.bf16.mxu0 0
        %1604 = vmatpush1.bf16.msra.mxu0 0
        %1605 = vmatprep.subr.bf16.mxu0 0
        %1606 = vmatpush1.bf16.msra.mxu0 0
        %1607 = vmatprep.subr.bf16.mxu0 0
        %1608 = vmatpush1.bf16.msra.mxu0 0
        %1609 = vmatprep.subr.bf16.mxu0 0
        %1610 = vmatpush1.bf16.msra.mxu0 0
        %1611 = vmatprep.subr.bf16.mxu0 0
        %1612 = vmatpush1.bf16.msra.mxu0 0
        %1613 = vmatprep.subr.bf16.mxu0 0
        %1614 = vmatpush1.bf16.msra.mxu0 0
        %1615 = vmatprep.subr.bf16.mxu0 0
        %1616 = vmatpush1.bf16.msra.mxu0 0
        %1617 = vmatprep.subr.bf16.mxu0 0
        %1618 = vmatpush1.bf16.msra.mxu0 0
        %1619 = vmatprep.subr.bf16.mxu0 0
        %1620 = vmatpush1.bf16.msra.mxu0 0
        %1621 = vmatprep.subr.bf16.mxu0 0
        %1622 = vmatpush1.bf16.msra.mxu0 0
        %1623 = vmatprep.subr.bf16.mxu0 0
        %1624 = vmatpush1.bf16.msra.mxu0 0
        %1625 = vmatprep.mubr.bf16.mxu0 0
        %1626 = vmatmul.mubr.bf16.gmra.mrb[0].mxu0 %v1591
        %v1627 = vpop.f32.mrb[0].mxu0
        %v1628 = vadd.f32 0.0, %v1627
        %v1629 = vpop.f32.mrb[0].mxu0
        %v1630 = vpop.f32.mrb[0].mxu0
        %v1631 = vpop.f32.mrb[0].mxu0
        %1632 = vdwg.mxu0
        %v1633 = vadd.f32 %v1554, %v1628
        %s1634 = scalar_lea.vmem [#allocation8], 224
        %v1635 = vld [vmem:[%s1634] sm:$0xf]
        %v1636 = vld [vmem:[%s1634 + $0x4] sm:$0xf]
        %v1637 = vld [vmem:[%s1634 + $0x8] sm:$0xf]
        %v1638 = vld [vmem:[%s1634 + $0xc] sm:$0xf]
        %v1639 = vld [vmem:[%s1634 + $0x10] sm:$0xf]
        %v1640 = vld [vmem:[%s1634 + $0x14] sm:$0xf]
        %v1641 = vld [vmem:[%s1634 + $0x18] sm:$0xf]
        %v1642 = vld [vmem:[%s1634 + $0x1c] sm:$0xf]
        %1644 = vrot.lane.b32.xlu0 %v1556, 120
        %v1645 = vpop.permute.xlu0 %1644
        %v1654 = vunpack.c.l.b16 %v1635
        %v1655 = vunpack.c.l.b16 %v1636
        %v1656 = vunpack.c.l.b16 %v1637
        %v1657 = vunpack.c.l.b16 %v1638
        %v1658 = vunpack.c.l.b16 %v1639
        %v1659 = vunpack.c.l.b16 %v1640
        %v1660 = vunpack.c.l.b16 %v1641
        %v1661 = vunpack.c.l.b16 %v1642
        %v1662 = vpack.c.b16 %v1655, %v1654
        %v1663 = vpack.c.b16 %v1657, %v1656
        %v1664 = vpack.c.b16 %v1659, %v1658
        %v1665 = vpack.c.b16 %v1661, %v1660
        %v1671 = vsel %vm1016, %v1645, 0
        %1673 = vmatprep.subr.bf16.mxu0 0
        %1674 = vmatpush1.bf16.msra.mxu0 %v1662
        %1675 = vmatprep.subr.bf16.mxu0 0
        %1676 = vmatpush1.bf16.msra.mxu0 %v1663
        %1677 = vmatprep.subr.bf16.mxu0 0
        %1678 = vmatpush1.bf16.msra.mxu0 %v1664
        %1679 = vmatprep.subr.bf16.mxu0 0
        %1680 = vmatpush1.bf16.msra.mxu0 %v1665
        %1681 = vmatprep.subr.bf16.mxu0 0
        %1682 = vmatpush1.bf16.msra.mxu0 0
        %1683 = vmatprep.subr.bf16.mxu0 0
        %1684 = vmatpush1.bf16.msra.mxu0 0
        %1685 = vmatprep.subr.bf16.mxu0 0
        %1686 = vmatpush1.bf16.msra.mxu0 0
        %1687 = vmatprep.subr.bf16.mxu0 0
        %1688 = vmatpush1.bf16.msra.mxu0 0
        %1689 = vmatprep.subr.bf16.mxu0 0
        %1690 = vmatpush1.bf16.msra.mxu0 0
        %1691 = vmatprep.subr.bf16.mxu0 0
        %1692 = vmatpush1.bf16.msra.mxu0 0
        %1693 = vmatprep.subr.bf16.mxu0 0
        %1694 = vmatpush1.bf16.msra.mxu0 0
        %1695 = vmatprep.subr.bf16.mxu0 0
        %1696 = vmatpush1.bf16.msra.mxu0 0
        %1697 = vmatprep.subr.bf16.mxu0 0
        %1698 = vmatpush1.bf16.msra.mxu0 0
        %1699 = vmatprep.subr.bf16.mxu0 0
        %1700 = vmatpush1.bf16.msra.mxu0 0
        %1701 = vmatprep.subr.bf16.mxu0 0
        %1702 = vmatpush1.bf16.msra.mxu0 0
        %1703 = vmatprep.subr.bf16.mxu0 0
        %1704 = vmatpush1.bf16.msra.mxu0 0
        %1705 = vmatprep.mubr.bf16.mxu0 0
        %1706 = vmatmul.mubr.bf16.gmra.mrb[0].mxu0 %v1671
        %v1707 = vpop.f32.mrb[0].mxu0
        %v1708 = vadd.f32 0.0, %v1707
        %v1709 = vpop.f32.mrb[0].mxu0
        %v1710 = vpop.f32.mrb[0].mxu0
        %v1711 = vpop.f32.mrb[0].mxu0
        %1712 = vdwg.mxu0
        %v1713 = vadd.f32 %v1633, %v1708
        %s1714 = scalar_lea.vmem [#allocation8], 256
        %v1715 = vld [vmem:[%s1714] sm:$0xf]
        %v1716 = vld [vmem:[%s1714 + $0x4] sm:$0xf]
        %v1717 = vld [vmem:[%s1714 + $0x8] sm:$0xf]
        %v1718 = vld [vmem:[%s1714 + $0xc] sm:$0xf]
        %v1719 = vld [vmem:[%s1714 + $0x10] sm:$0xf]
        %v1720 = vld [vmem:[%s1714 + $0x14] sm:$0xf]
        %v1721 = vld [vmem:[%s1714 + $0x18] sm:$0xf]
        %v1722 = vld [vmem:[%s1714 + $0x1c] sm:$0xf]
        %1723 = vrot.lane.b32.xlu0 %v1556, 112
        %v1724 = vpop.permute.xlu0 %1723
        %v1733 = vunpack.c.l.b16 %v1715
        %v1734 = vunpack.c.l.b16 %v1716
        %v1735 = vunpack.c.l.b16 %v1717
        %v1736 = vunpack.c.l.b16 %v1718
        %v1737 = vunpack.c.l.b16 %v1719
        %v1738 = vunpack.c.l.b16 %v1720
        %v1739 = vunpack.c.l.b16 %v1721
        %v1740 = vunpack.c.l.b16 %v1722
        %v1741 = vpack.c.b16 %v1734, %v1733
        %v1742 = vpack.c.b16 %v1736, %v1735
        %v1743 = vpack.c.b16 %v1738, %v1737
        %v1744 = vpack.c.b16 %v1740, %v1739
        %v1750 = vsel %vm1016, %v1724, 0
        %1752 = vmatprep.subr.bf16.mxu0 0
        %1753 = vmatpush1.bf16.msra.mxu0 %v1741
        %1754 = vmatprep.subr.bf16.mxu0 0
        %1755 = vmatpush1.bf16.msra.mxu0 %v1742
        %1756 = vmatprep.subr.bf16.mxu0 0
        %1757 = vmatpush1.bf16.msra.mxu0 %v1743
        %1758 = vmatprep.subr.bf16.mxu0 0
        %1759 = vmatpush1.bf16.msra.mxu0 %v1744
        %1760 = vmatprep.subr.bf16.mxu0 0
        %1761 = vmatpush1.bf16.msra.mxu0 0
        %1762 = vmatprep.subr.bf16.mxu0 0
        %1763 = vmatpush1.bf16.msra.mxu0 0
        %1764 = vmatprep.subr.bf16.mxu0 0
        %1765 = vmatpush1.bf16.msra.mxu0 0
        %1766 = vmatprep.subr.bf16.mxu0 0
        %1767 = vmatpush1.bf16.msra.mxu0 0
        %1768 = vmatprep.subr.bf16.mxu0 0
        %1769 = vmatpush1.bf16.msra.mxu0 0
        %1770 = vmatprep.subr.bf16.mxu0 0
        %1771 = vmatpush1.bf16.msra.mxu0 0
        %1772 = vmatprep.subr.bf16.mxu0 0
        %1773 = vmatpush1.bf16.msra.mxu0 0
        %1774 = vmatprep.subr.bf16.mxu0 0
        %1775 = vmatpush1.bf16.msra.mxu0 0
        %1776 = vmatprep.subr.bf16.mxu0 0
        %1777 = vmatpush1.bf16.msra.mxu0 0
        %1778 = vmatprep.subr.bf16.mxu0 0
        %1779 = vmatpush1.bf16.msra.mxu0 0
        %1780 = vmatprep.subr.bf16.mxu0 0
        %1781 = vmatpush1.bf16.msra.mxu0 0
        %1782 = vmatprep.subr.bf16.mxu0 0
        %1783 = vmatpush1.bf16.msra.mxu0 0
        %1784 = vmatprep.mubr.bf16.mxu0 0
        %1785 = vmatmul.mubr.bf16.gmra.mrb[0].mxu0 %v1750
        %v1786 = vpop.f32.mrb[0].mxu0
        %v1787 = vadd.f32 0.0, %v1786
        %v1788 = vpop.f32.mrb[0].mxu0
        %v1789 = vpop.f32.mrb[0].mxu0
        %v1790 = vpop.f32.mrb[0].mxu0
        %1791 = vdwg.mxu0
        %v1792 = vadd.f32 %v1713, %v1787
        %v1793 = vsel %vm1016, %v1792, 0.0
        %1794 = vadd.xlane.f32.xlu0 %v1793
        %v1795 = vpop.xlane.xlu0 %1794
        %v1796 = vrot.slane %v1795, 4
        %v1797 = vadd.f32 %v1795, %v1796
        %v1798 = vrot.slane %v1797, 2
        %v1799 = vadd.f32 %v1797, %v1798
        %v1800 = vrot.slane %v1799, 1
        %v1801 = vadd.f32 %v1799, %v1800
        %s1802 = vtos %v1801
        %v1803 = vmul.f32 %v1792, %v1792
        %v1804 = vsel %vm1016, %v1803, 0.0
        %1805 = vadd.xlane.f32.xlu0 %v1804
        %v1806 = vpop.xlane.xlu0 %1805
        %v1807 = vrot.slane %v1806, 4
        %v1808 = vadd.f32 %v1806, %v1807
        %v1809 = vrot.slane %v1808, 2
        %v1810 = vadd.f32 %v1808, %v1809
        %v1811 = vrot.slane %v1810, 1
        %v1812 = vadd.f32 %v1810, %v1811
        %s1813 = vtos %v1812
        %v1814 = vrcp.pop 512.0
        %s1815 = vtos %v1814
        %s1816 = smul.f32 %s1802, %s1815
        %v1817 = vrcp.pop 512.0
        %s1818 = vtos %v1817
        %s1819 = smul.f32 %s1813, %s1818
        %s1820 = smul.f32 %s1816, %s1816
        %s1821 = ssub.f32 %s1819, %s1820
        %s1822 = smax.f32 %s1821, 0.0
        %v1823 = vstv %s1816
        %v1824 = vsub.f32 %v1792, %v1823
        %s1825 = sadd.f32 %s1822, 1e-05
        %v1826 = vstv %s1825
        %v1827 = vrsqrt.pop %v1826
        %s1828 = vtos %v1827
        %v1829 = vstv %s1828
        %v1830 = vmul.f32 %v1824, %v1829
        %v1831 = vld [vmem:[%s5] sm:$0x1]
        %v1833 = vlaneseq
        %v1834 = vshrl.u32 %v1833, 7
        %v1835 = vsub.s32 0, %v1834
        %v1836 = vrot.slane %v1831, %v1835
        %v1838 = vmul.f32 %v1830, %v1836
        %v1839 = vld [vmem:[%s6] sm:$0x1]
        %v1841 = vlaneseq
        %v1842 = vshrl.u32 %v1841, 7
        %v1843 = vsub.s32 0, %v1842
        %v1844 = vrot.slane %v1839, %v1843
        %v1846 = vadd.f32 %v1838, %v1844
        %v1847 = vld [vmem:[%s450] sm:$0xf]
        %v1848 = vld [vmem:[%s8] sm:$0xf]
        %v1849 = vld [vmem:[%s8 + $0x4] sm:$0xf]
        %v1850 = vld [vmem:[%s8 + $0x8] sm:$0xf]
        %v1851 = vld [vmem:[%s8 + $0xc] sm:$0xf]
        %v1856 = vunpack.c.l.b16 %v1848
        %v1857 = vunpack.c.l.b16 %v1849
        %v1858 = vunpack.c.l.b16 %v1850
        %v1859 = vunpack.c.l.b16 %v1851
        %v1860 = vpack.c.b16 %v1857, %v1856
        %v1861 = vpack.c.b16 %v1859, %v1858
        %v1865 = vsel %vm476, %v1847, 0
        %1867 = vmatprep.subr.bf16.mxu0 0
        %1868 = vmatpush1.bf16.msra.mxu0 %v1860
        %1869 = vmatprep.subr.bf16.mxu0 0
        %1870 = vmatpush1.bf16.msra.mxu0 %v1861
        %1871 = vmatprep.subr.bf16.mxu0 0
        %1872 = vmatpush1.bf16.msra.mxu0 0
        %1873 = vmatprep.subr.bf16.mxu0 0
        %1874 = vmatpush1.bf16.msra.mxu0 0
        %1875 = vmatprep.subr.bf16.mxu0 0
        %1876 = vmatpush1.bf16.msra.mxu0 0
        %1877 = vmatprep.subr.bf16.mxu0 0
        %1878 = vmatpush1.bf16.msra.mxu0 0
        %1879 = vmatprep.subr.bf16.mxu0 0
        %1880 = vmatpush1.bf16.msra.mxu0 0
        %1881 = vmatprep.subr.bf16.mxu0 0
        %1882 = vmatpush1.bf16.msra.mxu0 0
        %1883 = vmatprep.subr.bf16.mxu0 0
        %1884 = vmatpush1.bf16.msra.mxu0 0
        %1885 = vmatprep.subr.bf16.mxu0 0
        %1886 = vmatpush1.bf16.msra.mxu0 0
        %1887 = vmatprep.subr.bf16.mxu0 0
        %1888 = vmatpush1.bf16.msra.mxu0 0
        %1889 = vmatprep.subr.bf16.mxu0 0
        %1890 = vmatpush1.bf16.msra.mxu0 0
        %1891 = vmatprep.subr.bf16.mxu0 0
        %1892 = vmatpush1.bf16.msra.mxu0 0
        %1893 = vmatprep.subr.bf16.mxu0 0
        %1894 = vmatpush1.bf16.msra.mxu0 0
        %1895 = vmatprep.subr.bf16.mxu0 0
        %1896 = vmatpush1.bf16.msra.mxu0 0
        %1897 = vmatprep.subr.bf16.mxu0 0
        %1898 = vmatpush1.bf16.msra.mxu0 0
        %1899 = vmatprep.mubr.bf16.mxu0 0
        %1900 = vmatmul.mubr.bf16.gmra.mrb[0].mxu0 %v1865
        %v1901 = vpop.f32.mrb[0].mxu0
        %v1902 = vadd.f32 0.0, %v1901
        %v1903 = vpop.f32.mrb[0].mxu0
        %v1904 = vpop.f32.mrb[0].mxu0
        %v1905 = vpop.f32.mrb[0].mxu0
        %1906 = vdwg.mxu0
        %v1907 = vsel %vm1016, %v1902, 0.0
        %1908 = vadd.xlane.f32.xlu0 %v1907
        %v1909 = vpop.xlane.xlu0 %1908
        %v1910 = vrot.slane %v1909, 4
        %v1911 = vadd.f32 %v1909, %v1910
        %v1912 = vrot.slane %v1911, 2
        %v1913 = vadd.f32 %v1911, %v1912
        %v1914 = vrot.slane %v1913, 1
        %v1915 = vadd.f32 %v1913, %v1914
        %s1916 = vtos %v1915
        %v1917 = vmul.f32 %v1902, %v1902
        %v1918 = vsel %vm1016, %v1917, 0.0
        %1919 = vadd.xlane.f32.xlu0 %v1918
        %v1920 = vpop.xlane.xlu0 %1919
        %v1921 = vrot.slane %v1920, 4
        %v1922 = vadd.f32 %v1920, %v1921
        %v1923 = vrot.slane %v1922, 2
        %v1924 = vadd.f32 %v1922, %v1923
        %v1925 = vrot.slane %v1924, 1
        %v1926 = vadd.f32 %v1924, %v1925
        %s1927 = vtos %v1926
        %v1928 = vrcp.pop 512.0
        %s1929 = vtos %v1928
        %s1930 = smul.f32 %s1916, %s1929
        %v1931 = vrcp.pop 512.0
        %s1932 = vtos %v1931
        %s1933 = smul.f32 %s1927, %s1932
        %s1934 = smul.f32 %s1930, %s1930
        %s1935 = ssub.f32 %s1933, %s1934
        %s1936 = smax.f32 %s1935, 0.0
        %v1937 = vstv %s1930
        %v1938 = vsub.f32 %v1902, %v1937
        %s1939 = sadd.f32 %s1936, 1e-05
        %v1940 = vstv %s1939
        %v1941 = vrsqrt.pop %v1940
        %s1942 = vtos %v1941
        %v1943 = vstv %s1942
        %v1944 = vmul.f32 %v1938, %v1943
        %v1945 = vld [vmem:[%s9] sm:$0x1]
        %v1947 = vlaneseq
        %v1948 = vshrl.u32 %v1947, 7
        %v1949 = vsub.s32 0, %v1948
        %v1950 = vrot.slane %v1945, %v1949
        %v1952 = vmul.f32 %v1944, %v1950
        %v1953 = vld [vmem:[%s10] sm:$0x1]
        %v1955 = vlaneseq
        %v1956 = vshrl.u32 %v1955, 7
        %v1957 = vsub.s32 0, %v1956
        %v1958 = vrot.slane %v1953, %v1957
        %v1960 = vadd.f32 %v1952, %v1958
        %v1961 = vadd.f32 %v1846, %v1960
        %v1962 = vmax.f32 %v1961, 0.0
        %v1963 = vpack.c.bf16 %v1962, %v1962
        %vm1964 = vcmask 519168
        %1965 = vst.msk [vmem:[%s446] sm:$0xf] %vm1964, %v1963
        %s1966 = sand.u32 %s278, 1
        %s1967 = scalar_lea.sflag [#allocation5], %s1966
        %s1968 = sand.u32 %s278, 1
        %s1969 = smul.addr %s1968, 4
        %s1970 = scalar_lea.vmem [#allocation9], %s1969
        // Predicated region
        $region77: #{tpu_custom_call.1} parent=63 // pred_check
          %p1971 = pneg %p288
        $region78: #{tpu_custom_call.1} parent=63 // pred_check_branch
          %1973 = sbr.rel (%p1971) target = $region80
        $region79: #{tpu_custom_call.1} parent=63 // pred_region
          %s1975 = ssub.s32 64, 64
          %1976 = vsyncadd %s1967, %s1975
          %s1977 = smul.addr %s29, 64
          %s1978 = scalar_lea.hbm %s11, %s1977
          %s1980 = sshll.u32 %s1970, 4
          %s1981 = int_to_ptr.vmem [resolvable:$true] %s1980
          %1983 = dma.vmem_to_hbm [thread:$0]  %s1981, 64, %s1978, %s1967
        $region80: #{tpu_custom_call.1} parent=63 // pred_fallthru
          _
      $region64: #{tpu_custom_call.1} parent=5 // pred_fallthru
        _
      %p1984 = scmp.le.s32.totalorder 2, %s24
      // Predicated region
      $region81: #{tpu_custom_call.1} parent=5 // pred_check
        %p1985 = pneg %p1984
      $region82: #{tpu_custom_call.1} parent=5 // pred_check_branch
        %1987 = sbr.rel (%p1985) target = $region84
      $region83: #{tpu_custom_call.1} parent=5 // pred_region
        %s1988 = ssub.s32 %s24, 2
        // Predicated region
        $region85: #{tpu_custom_call.1} parent=83 // pred_check
          %p1989 = pneg %p294
        $region86: #{tpu_custom_call.1} parent=83 // pred_check_branch
          %1991 = sbr.rel (%p1989) target = $region88
        $region87: #{tpu_custom_call.1} parent=83 // pred_region
          %s1992 = sand.u32 %s279, 1
          %s1993 = scalar_lea.sflag [#allocation5], %s1992
          %s1994 = sand.u32 %s279, 1
          %s1995 = smul.addr %s1994, 4
          %s1996 = scalar_lea.vmem [#allocation9], %s1995
          %1997 = dma.done %s1993, 64
        $region88: #{tpu_custom_call.1} parent=83 // pred_fallthru
          _
      $region84: #{tpu_custom_call.1} parent=5 // pred_fallthru
        _
    $region6: #{tpu_custom_call.1} parent=1 // loop_footer
      %s28 = sadd.s32 1, %s24
    $region7: #{tpu_custom_call.1} parent=1 // loop_footer_branch
      %23 = sbr.rel target = $region3
    $region8: #{tpu_custom_call.1} parent=1 // loop_exit
      _
    %1998 = vsyncpa [#allocation4], 1
    %s1999 = scalar_lea.sflag [#allocation4], 1
    %2000 = vsyncpa %s1999, 1
    %2001 = vsyncpa [#allocation7], 1
    %2002 = vsyncpa [#allocation5], 1
    %s2003 = scalar_lea.sflag [#allocation5], 1
    %2004 = vsyncpa %s2003, 1

</llo_original>
